<compile_context>
chip_gen: v6e
topology: v6e:2x2x1
jax: 0.10.0
libtpu: 0.0.40
codegen_flags: <defaults>
</compile_context>

<pallas_src>
import functools

import jax
import jax.numpy as jnp
import numpy as np
from jax.experimental import pallas as pl
from jax.experimental.pallas import tpu as pltpu


def _round_up(x, m):
    return ((x + m - 1) // m) * m


def _cdiv(a, b):
    return -(-a // b)


def _stats_kernel(frames_ref, dft_ref, psum_ref, psq_ref, *, f_pad, t_valid, t_tile):
    # frames_ref: (1, n_fft, t_tile) bf16 ; dft_ref: (2*f_pad, n_fft) bf16
    t = pl.program_id(1)
    x = frames_ref[0]                                               # (n_fft, t_tile)
    y = jnp.dot(dft_ref[...], x, preferred_element_type=jnp.float32)
    re = y[:f_pad, :]
    im = y[f_pad:, :]
    s = jnp.log1p(re * re + im * im)                                # padded F rows are exactly 0
    # Per-lane (per-time-column) partial sums; mask out padded time columns.
    col = jax.lax.broadcasted_iota(jnp.int32, (1, t_tile), 1) + t * t_tile
    valid = col < t_valid
    psum_ref[...] = jnp.where(valid, jnp.sum(s, axis=0, keepdims=True), 0.0)[None, None]
    psq_ref[...] = jnp.where(valid, jnp.sum(s * s, axis=0, keepdims=True), 0.0)[None, None]


def _spec_kernel(frames_ref, dft_ref, mean_ref, istd_ref, out_ref, *, f_pad, f_out):
    # Recompute DFT + log1p (cheap; MXU/EUP slack) and write the final, already
    # normalized, unpadded-F output directly -> no f32 intermediate in HBM.
    x = frames_ref[0]                                               # (n_fft, t_tile)
    y = jnp.dot(dft_ref[...], x, preferred_element_type=jnp.float32)
    re = y[:f_pad, :]
    im = y[f_pad:, :]
    s = jnp.log1p(re * re + im * im)                                # (f_pad, t_tile)
    out_ref[...] = ((s[:f_out, :] - mean_ref[...]) * istd_ref[...])[None]


def deepspeech_feature_extractor(audio, spec_cfg, normalize=True):
    # TODO(synk): the `isinstance(audio, list)` + pad_sequence path is host-side
    # glue; this kernel assumes an already-padded (B, L) batch.
    n_fft = int(spec_cfg["sample_rate"] * spec_cfg["window_size"])
    hop = int(spec_cfg["sample_rate"] * spec_cfg["window_stride"])
    B, L = audio.shape

    F = n_fft // 2 + 1
    F_pad = _round_up(F, 128)          # MXU row alignment only; never stored
    T = 1 + L // hop                   # torch.stft(center=True) frame count

    # ---- time tiling: lane-dense (multiple of 128), big enough to amortize
    # per-step overhead, but keep >= 2 grid steps for megacore when possible.
    t_tile = min(_round_up(T, 128), 1024)
    if B * _cdiv(T, t_tile) < 2 and t_tile > 128:
        t_tile = max(128, _round_up(_cdiv(T, 2), 128))
    n_tt = _cdiv(T, t_tile)
    T_frames = n_tt * t_tile

    # ---- framing in bf16 (torch.stft center=True, reflect pad), transposed ----
    audio = audio.astype(jnp.bfloat16)                              # halves framing traffic
    pad = n_fft // 2
    padded = jnp.pad(audio, ((0, 0), (pad, pad)), mode="reflect")   # (B, L + n_fft)
    extra = (T_frames - 1) * hop + n_fft - padded.shape[1]
    if extra > 0:
        padded = jnp.pad(padded, ((0, 0), (0, extra)))              # zero-extend tail only
    if n_fft % hop == 0 and padded.shape[1] % hop == 0:
        # Contiguous reshape + slices + concat: no XLA gather.
        m = n_fft // hop
        chunks_t = jnp.transpose(
            padded.reshape(B, padded.shape[1] // hop, hop), (0, 2, 1))
        frames_t = jnp.concatenate(
            [chunks_t[:, :, j:j + T_frames] for j in range(m)], axis=1)  # (B, n_fft, T_frames)
    else:
        # TODO(synk): gather fallback for configs where hop does not divide n_fft / L.
        idx = jnp.arange(n_fft)[:, None] + jnp.arange(T_frames)[None, :] * hop
        frames_t = padded[:, idx]                                   # (B, n_fft, T_frames)

    # ---- one-sided real-DFT matrix (transposed), Hamming window folded in ----
    n = np.arange(n_fft, dtype=np.float64)
    win = 0.54 - 0.46 * np.cos(2.0 * np.pi * n / n_fft)   # torch periodic hamming
    k = np.arange(F_pad, dtype=np.float64)
    ang = 2.0 * np.pi * k[:, None] * n[None, :] / n_fft
    mask = (k < F).astype(np.float64)[:, None]              # padded bins are exactly zero
    cos_t = np.cos(ang) * win[None, :] * mask
    sin_t = -np.sin(ang) * win[None, :] * mask
    dft_t = jnp.asarray(np.concatenate([cos_t, sin_t], axis=0), dtype=jnp.bfloat16)

    cparams = pltpu.CompilerParams(dimension_semantics=("parallel", "parallel"))

    if normalize:
        # Pass 1: stats only (tiny outputs, no F/T-plane intermediate in HBM).
        psum, psq = pl.pallas_call(
            functools.partial(_stats_kernel, f_pad=F_pad, t_valid=T, t_tile=t_tile),
            out_shape=(
                jax.ShapeDtypeStruct((B, n_tt, 1, t_tile), jnp.float32),
                jax.ShapeDtypeStruct((B, n_tt, 1, t_tile), jnp.float32),
            ),
            grid=(B, n_tt),
            in_specs=[
                pl.BlockSpec((1, n_fft, t_tile), lambda b, t: (b, 0, t)),
                pl.BlockSpec((2 * F_pad, n_fft), lambda b, t: (0, 0)),
            ],
            out_specs=(
                pl.BlockSpec((1, 1, 1, t_tile), lambda b, t: (b, t, 0, 0)),
                pl.BlockSpec((1, 1, 1, t_tile), lambda b, t: (b, t, 0, 0)),
            ),
            compiler_params=cparams,
        )(frames_t, dft_t)

        # Reduce the per-tile/per-lane partials in XLA (tiny, f32).
        # TODO(synk): a Welford-style combine would be more robust for very long audio.
        n_tot = float(B * T * F)
        ssum = jnp.sum(psum)
        ssq = jnp.sum(psq)
        mean = ssum / n_tot
        var = (ssq - n_tot * mean * mean) / (n_tot - 1.0)   # unbiased, like torch .std()
        istd = jax.lax.rsqrt(var)
        mean_arr = jnp.reshape(mean, (1, 1)).astype(jnp.float32)
        istd_arr = jnp.reshape(istd, (1, 1)).astype(jnp.float32)
    else:
        mean_arr = jnp.zeros((1, 1), jnp.float32)
        istd_arr = jnp.ones((1, 1), jnp.float32)

    # Pass 2: DFT + log1p + normalize, written straight to the unpadded-F,
    # unpadded-T output (edge time blocks are clipped by Pallas on writeback).
    spec = pl.pallas_call(
        functools.partial(_spec_kernel, f_pad=F_pad, f_out=F),
        out_shape=jax.ShapeDtypeStruct((B, F, T), jnp.float32),
        grid=(B, n_tt),
        in_specs=[
            pl.BlockSpec((1, n_fft, t_tile), lambda b, t: (b, 0, t)),
            pl.BlockSpec((2 * F_pad, n_fft), lambda b, t: (0, 0)),
            pl.BlockSpec((1, 1), lambda b, t: (0, 0)),
            pl.BlockSpec((1, 1), lambda b, t: (0, 0)),
        ],
        out_specs=pl.BlockSpec((1, F, t_tile), lambda b, t: (b, 0, t)),
        compiler_params=cparams,
    )(frames_t, dft_t, mean_arr, istd_arr)

    spec = spec[:, None, :, :]                               # (B, 1, F, T) NCHW, no copy
    lengths = jnp.array([T], dtype=jnp.int32)                # torch.LongTensor([T])
    return spec, lengths


def _reference(audio, spec_cfg, normalize=True):
    """Pure-JAX reference (rfft-based, f32) for correctness check."""
    n_fft = int(spec_cfg["sample_rate"] * spec_cfg["window_size"])
    hop = int(spec_cfg["sample_rate"] * spec_cfg["window_stride"])
    B, L = audio.shape
    n = jnp.arange(n_fft, dtype=jnp.float32)
    window = 0.54 - 0.46 * jnp.cos(2.0 * jnp.pi * n / n_fft)
    pad = n_fft // 2
    padded = jnp.pad(audio.astype(jnp.float32), ((0, 0), (pad, pad)), mode="reflect")
    T = 1 + L // hop
    idx = jnp.arange(T)[:, None] * hop + jnp.arange(n_fft)[None, :]
    frames = padded[:, idx] * window               # (B, T, n_fft)
    spec = jnp.abs(jnp.fft.rfft(frames, axis=-1)) ** 2
    spec = jnp.log1p(spec)
    if normalize:
        spec = (spec - spec.mean()) / spec.std(ddof=1)
    return jnp.transpose(spec, (0, 2, 1))[:, None, :, :]


if __name__ == "__main__":
    spec_cfg = {"sample_rate": 16000, "window_size": 0.008, "window_stride": 0.004}
    # -> n_fft = 128, hop = 64, F = 65; audio (2, 512) -> T = 9
    key = jax.random.PRNGKey(0)
    B, L = 2, 512
    audio = jax.random.normal(key, (B, L), dtype=jnp.float32)

    fe = jax.jit(functools.partial(deepspeech_feature_extractor,
                                   spec_cfg=spec_cfg, normalize=True))
    spec, lengths = fe(audio)
    spec = jax.block_until_ready(spec)
    lengths = jax.block_until_ready(lengths)

    ref = jax.block_until_ready(_reference(audio, spec_cfg, normalize=True))
    assert spec.shape == ref.shape == (B, 1, 128 // 2 + 1, 1 + L // 64)
    assert int(lengths[0]) == spec.shape[-1]

    spec_np = np.asarray(spec, dtype=np.float64)
    ref_np = np.asarray(ref, dtype=np.float64)
    # bf16 MXU inputs (per perf feedback) vs f32 rfft reference: tight mean-error
    # check + loose elementwise bound (cancellation bins); real bugs are O(1).
    assert float(np.abs(spec_np - ref_np).mean()) < 2e-2
    np.testing.assert_allclose(spec_np, ref_np, atol=1e-1, rtol=1e-1)

    print("KERNEL_OK")
</pallas_src>

<mosaic_0001>
module attributes {stable_mosaic.version = 11 : i64} {
  func.func @_stats_kernel(%arg0: i32, %arg1: i32, %arg2: memref<1x128x128xbf16, #tpu.memory_space<vmem>>, %arg3: memref<256x128xbf16, #tpu.memory_space<vmem>>, %arg4: memref<1x1x1x128xf32, #tpu.memory_space<vmem>>, %arg5: memref<1x1x1x128xf32, #tpu.memory_space<vmem>>) attributes {dimension_semantics = [#tpu.dimension_semantics<parallel>, #tpu.dimension_semantics<parallel>], iteration_bounds = array<i64: 2, 1>, scalar_prefetch = 0 : i64, scratch_operands = 0 : i64, tpu.core_type = #tpu.core_type<tc>, window_params = [{transform_indices = @transform_0, window_bounds = array<i64: 1, 128, 128>}, {pipeline_mode = #tpu.pipeline_mode<synchronous>, transform_indices = @transform_1, window_bounds = array<i64: 256, 128>}, {transform_indices = @transform_2, window_bounds = array<i64: 1, 1, 1, 128>}, {transform_indices = @transform_3, window_bounds = array<i64: 1, 1, 1, 128>}]} {
    %c0 = arith.constant 0 : index
    %c0_0 = arith.constant 0 : index
    %c0_1 = arith.constant 0 : index
    %0 = vector.load %arg2[%c0, %c0_0, %c0_1] : memref<1x128x128xbf16, #tpu.memory_space<vmem>>, vector<1x128x128xbf16>
    %1 = vector.shape_cast %0 : vector<1x128x128xbf16> to vector<128x128xbf16>
    %c0_2 = arith.constant 0 : index
    %c0_3 = arith.constant 0 : index
    %2 = vector.load %arg3[%c0_2, %c0_3] : memref<256x128xbf16, #tpu.memory_space<vmem>>, vector<256x128xbf16>
    %cst = arith.constant dense<0.000000e+00> : vector<256x128xf32>
    %3 = tpu.matmul %2, %1, %cst {dimension_numbers = #tpu.dot_dimension_numbers<[1], [0], [0], [1], [0, 0, 1, 1], [], []>} : vector<256x128xbf16>, vector<128x128xbf16>, vector<256x128xf32> -> vector<256x128xf32>
    %4 = vector.extract_strided_slice %3 {offsets = [0, 0], sizes = [128, 128], strides = [1, 1]} : vector<256x128xf32> to vector<128x128xf32>
    %5 = vector.extract_strided_slice %3 {offsets = [128, 0], sizes = [128, 128], strides = [1, 1]} : vector<256x128xf32> to vector<128x128xf32>
    %6 = arith.mulf %4, %4 : vector<128x128xf32>
    %7 = arith.mulf %5, %5 : vector<128x128xf32>
    %8 = arith.addf %6, %7 : vector<128x128xf32>
    %9 = math.log1p %8 : vector<128x128xf32>
    %10 = tpu.iota {dimensions = array<i32: 1>} : vector<1x128xi32>
    %c128_i32 = arith.constant 128 : i32
    %11 = arith.muli %arg1, %c128_i32 : i32
    %12 = vector.broadcast %11 : i32 to vector<1x128xi32>
    %13 = arith.addi %10, %12 : vector<1x128xi32>
    %c9_i32 = arith.constant 9 : i32
    %14 = vector.broadcast %c9_i32 : i32 to vector<1x128xi32>
    %15 = arith.cmpi slt, %13, %14 : vector<1x128xi32>
    %cst_4 = arith.constant dense<0.000000e+00> : vector<128xf32>
    %16 = vector.multi_reduction <add>, %9, %cst_4 [0] : vector<128x128xf32> to vector<128xf32>
    %17 = vector.shape_cast %16 : vector<128xf32> to vector<1x128xf32>
    %cst_5 = arith.constant 0.000000e+00 : f32
    %18 = vector.broadcast %cst_5 : f32 to vector<1x128xf32>
    %19 = arith.select %15, %17, %18 : vector<1x128xi1>, vector<1x128xf32>
    %20 = vector.shape_cast %19 : vector<1x128xf32> to vector<1x1x1x128xf32>
    %c0_6 = arith.constant 0 : index
    %c0_7 = arith.constant 0 : index
    %c0_8 = arith.constant 0 : index
    %c0_9 = arith.constant 0 : index
    %21 = vector.load %arg4[%c0_6, %c0_7, %c0_8, %c0_9] : memref<1x1x1x128xf32, #tpu.memory_space<vmem>>, vector<1x1x1x128xf32>
    tpu.vector_store %arg4[%c0_6, %c0_7, %c0_8, %c0_9], %20 {strides = array<i32>} : memref<1x1x1x128xf32, #tpu.memory_space<vmem>>, vector<1x1x1x128xf32>,
    %22 = arith.mulf %9, %9 : vector<128x128xf32>
    %cst_10 = arith.constant dense<0.000000e+00> : vector<128xf32>
    %23 = vector.multi_reduction <add>, %22, %cst_10 [0] : vector<128x128xf32> to vector<128xf32>
    %24 = vector.shape_cast %23 : vector<128xf32> to vector<1x128xf32>
    %cst_11 = arith.constant 0.000000e+00 : f32
    %25 = vector.broadcast %cst_11 : f32 to vector<1x128xf32>
    %26 = arith.select %15, %24, %25 : vector<1x128xi1>, vector<1x128xf32>
    %27 = vector.shape_cast %26 : vector<1x128xf32> to vector<1x1x1x128xf32>
    %c0_12 = arith.constant 0 : index
    %c0_13 = arith.constant 0 : index
    %c0_14 = arith.constant 0 : index
    %c0_15 = arith.constant 0 : index
    %28 = vector.load %arg5[%c0_12, %c0_13, %c0_14, %c0_15] : memref<1x1x1x128xf32, #tpu.memory_space<vmem>>, vector<1x1x1x128xf32>
    tpu.vector_store %arg5[%c0_12, %c0_13, %c0_14, %c0_15], %27 {strides = array<i32>} : memref<1x1x1x128xf32, #tpu.memory_space<vmem>>, vector<1x1x1x128xf32>,
    return
  }
  func.func @transform_0(%arg0: i32, %arg1: i32) -> (i32, i32, i32) {
    %c0_i32 = arith.constant 0 : i32
    %c0_i32_0 = arith.constant 0 : i32
    return %arg0, %c0_i32, %arg1 : i32, i32, i32
  }
  func.func @transform_1(%arg0: i32, %arg1: i32) -> (i32, i32) {
    %c0_i32 = arith.constant 0 : i32
    %c0_i32_0 = arith.constant 0 : i32
    %c0_i32_1 = arith.constant 0 : i32
    return %c0_i32, %c0_i32_0 : i32, i32
  }
  func.func @transform_2(%arg0: i32, %arg1: i32) -> (i32, i32, i32, i32) {
    %c0_i32 = arith.constant 0 : i32
    %c0_i32_0 = arith.constant 0 : i32
    %c0_i32_1 = arith.constant 0 : i32
    return %arg0, %arg1, %c0_i32, %c0_i32_0 : i32, i32, i32, i32
  }
  func.func @transform_3(%arg0: i32, %arg1: i32) -> (i32, i32, i32, i32) {
    %c0_i32 = arith.constant 0 : i32
    %c0_i32_0 = arith.constant 0 : i32
    %c0_i32_1 = arith.constant 0 : i32
    return %arg0, %arg1, %c0_i32, %c0_i32_0 : i32, i32, i32, i32
  }
}

module attributes {stable_mosaic.version = 11 : i64} {
  func.func @_spec_kernel(%arg0: i32, %arg1: i32, %arg2: memref<1x128x128xbf16, #tpu.memory_space<vmem>>, %arg3: memref<256x128xbf16, #tpu.memory_space<vmem>>, %arg4: memref<1x1xf32, #tpu.memory_space<vmem>>, %arg5: memref<1x1xf32, #tpu.memory_space<vmem>>, %arg6: memref<1x65x128xf32, #tpu.memory_space<vmem>>) attributes {dimension_semantics = [#tpu.dimension_semantics<parallel>, #tpu.dimension_semantics<parallel>], iteration_bounds = array<i64: 2, 1>, scalar_prefetch = 0 : i64, scratch_operands = 0 : i64, tpu.core_type = #tpu.core_type<tc>, window_params = [{transform_indices = @transform_0, window_bounds = array<i64: 1, 128, 128>}, {pipeline_mode = #tpu.pipeline_mode<synchronous>, transform_indices = @transform_1, window_bounds = array<i64: 256, 128>}, {pipeline_mode = #tpu.pipeline_mode<synchronous>, transform_indices = @transform_2, window_bounds = array<i64: 1, 1>}, {pipeline_mode = #tpu.pipeline_mode<synchronous>, transform_indices = @transform_3, window_bounds = array<i64: 1, 1>}, {transform_indices = @transform_4, window_bounds = array<i64: 1, 65, 128>}]} {
    %c0 = arith.constant 0 : index
    %c0_0 = arith.constant 0 : index
    %c0_1 = arith.constant 0 : index
    %0 = vector.load %arg2[%c0, %c0_0, %c0_1] : memref<1x128x128xbf16, #tpu.memory_space<vmem>>, vector<1x128x128xbf16>
    %1 = vector.shape_cast %0 : vector<1x128x128xbf16> to vector<128x128xbf16>
    %c0_2 = arith.constant 0 : index
    %c0_3 = arith.constant 0 : index
    %2 = vector.load %arg3[%c0_2, %c0_3] : memref<256x128xbf16, #tpu.memory_space<vmem>>, vector<256x128xbf16>
    %cst = arith.constant dense<0.000000e+00> : vector<256x128xf32>
    %3 = tpu.matmul %2, %1, %cst {dimension_numbers = #tpu.dot_dimension_numbers<[1], [0], [0], [1], [0, 0, 1, 1], [], []>} : vector<256x128xbf16>, vector<128x128xbf16>, vector<256x128xf32> -> vector<256x128xf32>
    %4 = vector.extract_strided_slice %3 {offsets = [0, 0], sizes = [128, 128], strides = [1, 1]} : vector<256x128xf32> to vector<128x128xf32>
    %5 = vector.extract_strided_slice %3 {offsets = [128, 0], sizes = [128, 128], strides = [1, 1]} : vector<256x128xf32> to vector<128x128xf32>
    %6 = arith.mulf %4, %4 : vector<128x128xf32>
    %7 = arith.mulf %5, %5 : vector<128x128xf32>
    %8 = arith.addf %6, %7 : vector<128x128xf32>
    %9 = math.log1p %8 : vector<128x128xf32>
    %10 = vector.extract_strided_slice %9 {offsets = [0, 0], sizes = [65, 128], strides = [1, 1]} : vector<128x128xf32> to vector<65x128xf32>
    %c0_4 = arith.constant 0 : index
    %c0_5 = arith.constant 0 : index
    %11 = vector.load %arg4[%c0_4, %c0_5] : memref<1x1xf32, #tpu.memory_space<vmem>>, vector<1x1xf32>
    %12 = vector.broadcast %11 : vector<1x1xf32> to vector<65x128xf32>
    %13 = arith.subf %10, %12 : vector<65x128xf32>
    %c0_6 = arith.constant 0 : index
    %c0_7 = arith.constant 0 : index
    %14 = vector.load %arg5[%c0_6, %c0_7] : memref<1x1xf32, #tpu.memory_space<vmem>>, vector<1x1xf32>
    %15 = vector.broadcast %14 : vector<1x1xf32> to vector<65x128xf32>
    %16 = arith.mulf %13, %15 : vector<65x128xf32>
    %17 = vector.shape_cast %16 : vector<65x128xf32> to vector<1x65x128xf32>
    %c0_8 = arith.constant 0 : index
    %c0_9 = arith.constant 0 : index
    %c0_10 = arith.constant 0 : index
    %18 = vector.load %arg6[%c0_8, %c0_9, %c0_10] : memref<1x65x128xf32, #tpu.memory_space<vmem>>, vector<1x65x128xf32>
    tpu.vector_store %arg6[%c0_8, %c0_9, %c0_10], %17 {strides = array<i32>} : memref<1x65x128xf32, #tpu.memory_space<vmem>>, vector<1x65x128xf32>,
    return
  }
  func.func @transform_0(%arg0: i32, %arg1: i32) -> (i32, i32, i32) {
    %c0_i32 = arith.constant 0 : i32
    %c0_i32_0 = arith.constant 0 : i32
    return %arg0, %c0_i32, %arg1 : i32, i32, i32
  }
  func.func @transform_1(%arg0: i32, %arg1: i32) -> (i32, i32) {
    %c0_i32 = arith.constant 0 : i32
    %c0_i32_0 = arith.constant 0 : i32
    %c0_i32_1 = arith.constant 0 : i32
    return %c0_i32, %c0_i32_0 : i32, i32
  }
  func.func @transform_2(%arg0: i32, %arg1: i32) -> (i32, i32) {
    %c0_i32 = arith.constant 0 : i32
    %c0_i32_0 = arith.constant 0 : i32
    %c0_i32_1 = arith.constant 0 : i32
    return %c0_i32, %c0_i32_0 : i32, i32
  }
  func.func @transform_3(%arg0: i32, %arg1: i32) -> (i32, i32) {
    %c0_i32 = arith.constant 0 : i32
    %c0_i32_0 = arith.constant 0 : i32
    %c0_i32_1 = arith.constant 0 : i32
    return %c0_i32, %c0_i32_0 : i32, i32
  }
  func.func @transform_4(%arg0: i32, %arg1: i32) -> (i32, i32, i32) {
    %c0_i32 = arith.constant 0 : i32
    %c0_i32_0 = arith.constant 0 : i32
    return %arg0, %c0_i32, %arg1 : i32, i32, i32
  }
}

</mosaic_0001>

<llo_original>
// kernel: deepspeech_feature_extractor.2
$region0: #{deepspeech_feature_extractor.2}
  #allocation0 [shape = 'u32[]', space=smem, size = 0x4, offset = 0x4, fixed_abs, tag = 'smem constant byte address 0x4 - core index']
  #allocation1 [shape = 'u32[144,128]{1,0:T(1,128)}', space=vmem, size = 0x12000, scoped, tag = 'internal scratch']
  %s0 = inlined_call_operand.vmem [shape: bf16[2,128,128], index: 0, kind: input, shape index: {}]
  %s1 = inlined_call_operand.vmem [shape: bf16[256,128], index: 1, kind: input, shape index: {}]
  %s2 = inlined_call_operand.vmem [shape: f32[2,1,1,128], index: 2, kind: output, shape index: {0}]
  %s3 = inlined_call_operand.vmem [shape: f32[2,1,1,128], index: 3, kind: output, shape index: {1}]
  %4 = xla_tuple %s2, %s3
  %s5 = sld [smem:[#allocation0]]
  $region49: #{deepspeech_feature_extractor.2} parent=0
    _
  %s7 = ssub.s32 1, %s5
  %s8 = scalar_select 0, %s7, %s5
  loop: start=0, step=1, limit=4
  $region2: #{deepspeech_feature_extractor.2} parent=0 // loop_pre_header
    _
  $region3: #{deepspeech_feature_extractor.2} parent=0 // loop_header
    %s10 = sphi 0, %s14
    %p11 = scmp.ge.s32.totalorder %s10, 4
    %s17 = sphi 0, %s29
    %s18 = sphi 0, %s25
    %s19 = sphi 0, %s17
    %s20 = sphi 0, %s18
    %s21 = sphi 0, %s19
    %s22 = sphi 0, %s20
    %s34 = sphi 0, %s36
    %s37 = sphi 0, %s34
    %s38 = sphi 0, %s37
    %s54 = sphi 0, %s38
    %s58 = sphi 0, %s58
    %s60 = sphi 0, %s58
    %s61 = sphi 0, %s60
    %s75 = sphi 0, %s61
    %s83 = sphi 0, %s85
    %s86 = sphi 0, %s83
    %s87 = sphi 0, %s86
    %s103 = sphi 0, %s87
    %s111 = sphi 0, %s113
    %s114 = sphi 0, %s111
    %s115 = sphi 0, %s114
    %s131 = sphi 0, %s115
  $region4: #{deepspeech_feature_extractor.2} parent=0 // loop_header_branch
    %13 = sbr.rel (%p11) target = $region8
  $region5: #{deepspeech_feature_extractor.2} parent=0 // loop_body
    %s15 = ssub.s32 %s10, 1
    %s16 = ssub.s32 %s10, 2
    %s23 = sadd.s32 1, %s18
    %p24 = scmp.ge.s32.totalorder %s23, 1
    %s25 = scalar_select %p24, 0, %s23
    %s26 = sadd.s32 1, %s17
    %s27 = scalar_select %p24, %s26, %s17
    %p28 = scmp.ge.s32.totalorder %s27, 2
    %s29 = scalar_select %p28, 0, %s27
    %s30 = ssub.s32 %s17, %s29
    %s31 = ssub.s32 %s18, %s25
    %s32 = sor.u32 %s30, %s31
    %p33 = scmp.eq.s32.totalorder %s32, 0
    %s35 = sadd.s32 %s34, 1
    %s36 = scalar_select %p33, %s34, %s35
    %p39 = pneg %p33
    %p40 = scmp.eq.s32.totalorder %s10, 1
    %p41 = por %p39, %p40
    %p42 = scmp.ne.s32.totalorder %s34, %s37
    %p43 = scmp.eq.s32.totalorder %s10, 0
    %p44 = por %p42, %p43
    %p45 = scmp.ne.s32.totalorder %s34, %s37
    %p46 = scmp.eq.s32.totalorder %s15, 1
    %p47 = por %p45, %p46
    %p48 = scmp.ne.s32.totalorder %s37, %s38
    %p49 = scmp.eq.s32.totalorder %s15, 0
    %p50 = por %p48, %p49
    %p51 = scmp.ne.s32.totalorder %s37, %s38
    %p52 = scmp.eq.s32.totalorder %s16, 1
    %p53 = por %p51, %p52
    %p55 = scmp.ne.s32.totalorder %s38, %s54
    %p56 = scmp.eq.s32.totalorder %s16, 0
    %p57 = por %p55, %p56
    %s59 = sadd.s32 %s58, 1
    %p62 = scmp.eq.s32.totalorder %s10, 1
    %p63 = scmp.ne.s32.totalorder %s58, %s60
    %p64 = scmp.eq.s32.totalorder %s10, 0
    %p65 = por %p63, %p64
    %p66 = scmp.ne.s32.totalorder %s58, %s60
    %p67 = scmp.eq.s32.totalorder %s15, 1
    %p68 = por %p66, %p67
    %p69 = scmp.ne.s32.totalorder %s60, %s61
    %p70 = scmp.eq.s32.totalorder %s15, 0
    %p71 = por %p69, %p70
    %p72 = scmp.ne.s32.totalorder %s60, %s61
    %p73 = scmp.eq.s32.totalorder %s16, 1
    %p74 = por %p72, %p73
    %p76 = scmp.ne.s32.totalorder %s61, %s75
    %p77 = scmp.eq.s32.totalorder %s16, 0
    %p78 = por %p76, %p77
    %s79 = ssub.s32 %s17, %s29
    %s80 = ssub.s32 %s18, %s25
    %s81 = sor.u32 %s79, %s80
    %p82 = scmp.eq.s32.totalorder %s81, 0
    %s84 = sadd.s32 %s83, 1
    %s85 = scalar_select %p82, %s83, %s84
    %p88 = pneg %p82
    %p89 = scmp.eq.s32.totalorder %s10, 1
    %p90 = por %p88, %p89
    %p91 = scmp.ne.s32.totalorder %s83, %s86
    %p92 = scmp.eq.s32.totalorder %s10, 0
    %p93 = por %p91, %p92
    %p94 = scmp.ne.s32.totalorder %s83, %s86
    %p95 = scmp.eq.s32.totalorder %s15, 1
    %p96 = por %p94, %p95
    %p97 = scmp.ne.s32.totalorder %s86, %s87
    %p98 = scmp.eq.s32.totalorder %s15, 0
    %p99 = por %p97, %p98
    %p100 = scmp.ne.s32.totalorder %s86, %s87
    %p101 = scmp.eq.s32.totalorder %s16, 1
    %p102 = por %p100, %p101
    %p104 = scmp.ne.s32.totalorder %s87, %s103
    %p105 = scmp.eq.s32.totalorder %s16, 0
    %p106 = por %p104, %p105
    %s107 = ssub.s32 %s17, %s29
    %s108 = ssub.s32 %s18, %s25
    %s109 = sor.u32 %s107, %s108
    %p110 = scmp.eq.s32.totalorder %s109, 0
    %s112 = sadd.s32 %s111, 1
    %s113 = scalar_select %p110, %s111, %s112
    %p116 = pneg %p110
    %p117 = scmp.eq.s32.totalorder %s10, 1
    %p118 = por %p116, %p117
    %p119 = scmp.ne.s32.totalorder %s111, %s114
    %p120 = scmp.eq.s32.totalorder %s10, 0
    %p121 = por %p119, %p120
    %p122 = scmp.ne.s32.totalorder %s111, %s114
    %p123 = scmp.eq.s32.totalorder %s15, 1
    %p124 = por %p122, %p123
    %p125 = scmp.ne.s32.totalorder %s114, %s115
    %p126 = scmp.eq.s32.totalorder %s15, 0
    %p127 = por %p125, %p126
    %p128 = scmp.ne.s32.totalorder %s114, %s115
    %p129 = scmp.eq.s32.totalorder %s16, 1
    %p130 = por %p128, %p129
    %p132 = scmp.ne.s32.totalorder %s115, %s131
    %p133 = scmp.eq.s32.totalorder %s16, 0
    %p134 = por %p132, %p133
    %p135 = scmp.le.s32.totalorder 1, %s10
    %p136 = scmp.lt.s32.totalorder %s10, 3
    %p137 = pnand %p135, %p136
    %p138 = pneg %p137
    // Predicated region
    $region9: #{deepspeech_feature_extractor.2} parent=5 // pred_check
      _
    $region10: #{deepspeech_feature_extractor.2} parent=5 // pred_check_branch
      %140 = sbr.rel (%p137) target = $region12
    $region11: #{deepspeech_feature_extractor.2} parent=5 // pred_region
      %s141 = ssub.s32 %s10, 1
      // Predicated region
      $region13: #{deepspeech_feature_extractor.2} parent=11 // pred_check
        %p142 = pneg %p71
      $region14: #{deepspeech_feature_extractor.2} parent=11 // pred_check_branch
        %144 = sbr.rel (%p142) target = $region16
      $region15: #{deepspeech_feature_extractor.2} parent=11 // pred_region
        _
      $region16: #{deepspeech_feature_extractor.2} parent=11 // pred_fallthru
        _
    $region12: #{deepspeech_feature_extractor.2} parent=5 // pred_fallthru
      _
    %p145 = scmp.lt.s32.totalorder %s10, 2
    // Predicated region
    $region17: #{deepspeech_feature_extractor.2} parent=5 // pred_check
      %p146 = pneg %p145
    $region18: #{deepspeech_feature_extractor.2} parent=5 // pred_check_branch
      %148 = sbr.rel (%p146) target = $region20
    $region19: #{deepspeech_feature_extractor.2} parent=5 // pred_region
      // Predicated region
      $region21: #{deepspeech_feature_extractor.2} parent=19 // pred_check
        %p149 = pneg %p44
      $region22: #{deepspeech_feature_extractor.2} parent=19 // pred_check_branch
        %151 = sbr.rel (%p149) target = $region24
      $region23: #{deepspeech_feature_extractor.2} parent=19 // pred_region
        %p152 = scmp.lt.s32.totalorder %s17, 1
        %s153 = scalar_select %p152, %s17, 1
        %p154 = scmp.lt.s32.totalorder %s18, 0
        %s155 = scalar_select %p154, %s18, 0
        %s156 = smul.addr %s153, 16
        %s157 = sadd.s32 %s155, %s156
        %s158 = smul.addr %s157, 4
        %s159 = scalar_lea.vmem %s0, %s158
      $region24: #{deepspeech_feature_extractor.2} parent=19 // pred_fallthru
        _
    $region20: #{deepspeech_feature_extractor.2} parent=5 // pred_fallthru
      _
    %p160 = scmp.le.s32.totalorder 1, %s10
    %p161 = scmp.lt.s32.totalorder %s10, 3
    %p162 = pnand %p160, %p161
    %p163 = pneg %p162
    // Predicated region
    $region25: #{deepspeech_feature_extractor.2} parent=5 // pred_check
      _
    $region26: #{deepspeech_feature_extractor.2} parent=5 // pred_check_branch
      %165 = sbr.rel (%p162) target = $region28
    $region27: #{deepspeech_feature_extractor.2} parent=5 // pred_region
      %s166 = ssub.s32 %s10, 1
      %p167 = scmp.lt.s32.totalorder %s19, 1
      %s168 = scalar_select %p167, %s19, 1
      %p169 = scmp.lt.s32.totalorder %s20, 0
      %s170 = scalar_select %p169, %s20, 0
      %s171 = smul.addr %s168, 16
      %s172 = sadd.s32 %s170, %s171
      %s173 = smul.addr %s172, 4
      %s174 = scalar_lea.vmem %s0, %s173
      %p175 = pneg %p50
      %p176 = pneg %p47
      %p177 = pneg %p71
      %p178 = pneg %p68
      %p179 = pneg %p99
      %p180 = pneg %p96
      %p181 = scmp.lt.s32.totalorder %s19, 1
      %s182 = scalar_select %p181, %s19, 1
      %p183 = scmp.lt.s32.totalorder %s20, 0
      %s184 = scalar_select %p183, %s20, 0
      %s185 = sadd.s32 %s184, %s182
      %s186 = scalar_lea.vmem %s2, %s185
      %p187 = pneg %p127
      %p188 = pneg %p124
      %p189 = scmp.lt.s32.totalorder %s19, 1
      %s190 = scalar_select %p189, %s19, 1
      %p191 = scmp.lt.s32.totalorder %s20, 0
      %s192 = scalar_select %p191, %s20, 0
      %s193 = sadd.s32 %s192, %s190
      %s194 = scalar_lea.vmem %s3, %s193
      %p195 = scmp.lt.s32.totalorder %s19, 1
      %s196 = scalar_select %p195, %s19, 1
      %p197 = scmp.lt.s32.totalorder %s20, 0
      %s198 = scalar_select %p197, %s20, 0
      %s199 = smul.addr %s196, 16
      %s200 = sadd.s32 %s198, %s199
      %s201 = smul.addr %s200, 4
      %s202 = scalar_lea.vmem %s0, %s201
      %p203 = scmp.lt.s32.totalorder %s19, 1
      %s204 = scalar_select %p203, %s19, 1
      %p205 = scmp.lt.s32.totalorder %s20, 0
      %s206 = scalar_select %p205, %s20, 0
      %s207 = sadd.s32 %s206, %s204
      %s208 = scalar_lea.vmem %s2, %s207
      %p209 = scmp.lt.s32.totalorder %s19, 1
      %s210 = scalar_select %p209, %s19, 1
      %p211 = scmp.lt.s32.totalorder %s20, 0
      %s212 = scalar_select %p211, %s20, 0
      %s213 = sadd.s32 %s212, %s210
      %s214 = scalar_lea.vmem %s3, %s213
      %v216 = vld [vmem:[%s202] sm:$0xf]
      %v217 = vld [vmem:[%s202 + $0x4] sm:$0xf]
      %v218 = vld [vmem:[%s202 + $0x8] sm:$0xf]
      %v219 = vld [vmem:[%s202 + $0xc] sm:$0xf]
      %v220 = vld [vmem:[%s202 + $0x10] sm:$0xf]
      %v221 = vld [vmem:[%s202 + $0x14] sm:$0xf]
      %v222 = vld [vmem:[%s202 + $0x18] sm:$0xf]
      %v223 = vld [vmem:[%s202 + $0x1c] sm:$0xf]
      %v224 = vld [vmem:[%s202 + $0x20] sm:$0xf]
      %v225 = vld [vmem:[%s202 + $0x24] sm:$0xf]
      %v226 = vld [vmem:[%s202 + $0x28] sm:$0xf]
      %v227 = vld [vmem:[%s202 + $0x2c] sm:$0xf]
      %v228 = vld [vmem:[%s202 + $0x30] sm:$0xf]
      %v229 = vld [vmem:[%s202 + $0x34] sm:$0xf]
      %v230 = vld [vmem:[%s202 + $0x38] sm:$0xf]
      %v231 = vld [vmem:[%s202 + $0x3c] sm:$0xf]
      %v232 = vld [vmem:[%s1] sm:$0xf]
      %v233 = vld [vmem:[%s1 + $0x4] sm:$0xf]
      %v234 = vld [vmem:[%s1 + $0x8] sm:$0xf]
      %v235 = vld [vmem:[%s1 + $0xc] sm:$0xf]
      %v236 = vld [vmem:[%s1 + $0x10] sm:$0xf]
      %v237 = vld [vmem:[%s1 + $0x14] sm:$0xf]
      %v238 = vld [vmem:[%s1 + $0x18] sm:$0xf]
      %v239 = vld [vmem:[%s1 + $0x1c] sm:$0xf]
      %v240 = vld [vmem:[%s1 + $0x20] sm:$0xf]
      %v241 = vld [vmem:[%s1 + $0x24] sm:$0xf]
      %v242 = vld [vmem:[%s1 + $0x28] sm:$0xf]
      %v243 = vld [vmem:[%s1 + $0x2c] sm:$0xf]
      %v244 = vld [vmem:[%s1 + $0x30] sm:$0xf]
      %v245 = vld [vmem:[%s1 + $0x34] sm:$0xf]
      %v246 = vld [vmem:[%s1 + $0x38] sm:$0xf]
      %v247 = vld [vmem:[%s1 + $0x3c] sm:$0xf]
      %v248 = vld [vmem:[%s1 + $0x40] sm:$0xf]
      %v249 = vld [vmem:[%s1 + $0x44] sm:$0xf]
      %v250 = vld [vmem:[%s1 + $0x48] sm:$0xf]
      %v251 = vld [vmem:[%s1 + $0x4c] sm:$0xf]
      %v252 = vld [vmem:[%s1 + $0x50] sm:$0xf]
      %v253 = vld [vmem:[%s1 + $0x54] sm:$0xf]
      %v254 = vld [vmem:[%s1 + $0x58] sm:$0xf]
      %v255 = vld [vmem:[%s1 + $0x5c] sm:$0xf]
      %v256 = vld [vmem:[%s1 + $0x60] sm:$0xf]
      %v257 = vld [vmem:[%s1 + $0x64] sm:$0xf]
      %v258 = vld [vmem:[%s1 + $0x68] sm:$0xf]
      %v259 = vld [vmem:[%s1 + $0x6c] sm:$0xf]
      %v260 = vld [vmem:[%s1 + $0x70] sm:$0xf]
      %v261 = vld [vmem:[%s1 + $0x74] sm:$0xf]
      %v262 = vld [vmem:[%s1 + $0x78] sm:$0xf]
      %v263 = vld [vmem:[%s1 + $0x7c] sm:$0xf]
      %v296 = vunpack.c.l.b16 %v232
      %v297 = vunpack.c.l.b16 %v233
      %v298 = vunpack.c.l.b16 %v234
      %v299 = vunpack.c.l.b16 %v235
      %v300 = vunpack.c.l.b16 %v236
      %v301 = vunpack.c.l.b16 %v237
      %v302 = vunpack.c.l.b16 %v238
      %v303 = vunpack.c.l.b16 %v239
      %v304 = vunpack.c.l.b16 %v240
      %v305 = vunpack.c.l.b16 %v241
      %v306 = vunpack.c.l.b16 %v242
      %v307 = vunpack.c.l.b16 %v243
      %v308 = vunpack.c.l.b16 %v244
      %v309 = vunpack.c.l.b16 %v245
      %v310 = vunpack.c.l.b16 %v246
      %v311 = vunpack.c.l.b16 %v247
      %v312 = vunpack.c.l.b16 %v248
      %v313 = vunpack.c.l.b16 %v249
      %v314 = vunpack.c.l.b16 %v250
      %v315 = vunpack.c.l.b16 %v251
      %v316 = vunpack.c.l.b16 %v252
      %v317 = vunpack.c.l.b16 %v253
      %v318 = vunpack.c.l.b16 %v254
      %v319 = vunpack.c.l.b16 %v255
      %v320 = vunpack.c.l.b16 %v256
      %v321 = vunpack.c.l.b16 %v257
      %v322 = vunpack.c.l.b16 %v258
      %v323 = vunpack.c.l.b16 %v259
      %v324 = vunpack.c.l.b16 %v260
      %v325 = vunpack.c.l.b16 %v261
      %v326 = vunpack.c.l.b16 %v262
      %v327 = vunpack.c.l.b16 %v263
      %v328 = vpack.c.b16 %v297, %v296
      %v329 = vpack.c.b16 %v299, %v298
      %v330 = vpack.c.b16 %v301, %v300
      %v331 = vpack.c.b16 %v303, %v302
      %v332 = vpack.c.b16 %v305, %v304
      %v333 = vpack.c.b16 %v307, %v306
      %v334 = vpack.c.b16 %v309, %v308
      %v335 = vpack.c.b16 %v311, %v310
      %v336 = vpack.c.b16 %v313, %v312
      %v337 = vpack.c.b16 %v315, %v314
      %v338 = vpack.c.b16 %v317, %v316
      %v339 = vpack.c.b16 %v319, %v318
      %v340 = vpack.c.b16 %v321, %v320
      %v341 = vpack.c.b16 %v323, %v322
      %v342 = vpack.c.b16 %v325, %v324
      %v343 = vpack.c.b16 %v327, %v326
      %v376 = vunpack.c.l.b16 %v216
      %v377 = vunpack.c.l.b16 %v217
      %v378 = vunpack.c.l.b16 %v218
      %v379 = vunpack.c.l.b16 %v219
      %v380 = vunpack.c.l.b16 %v220
      %v381 = vunpack.c.l.b16 %v221
      %v382 = vunpack.c.l.b16 %v222
      %v383 = vunpack.c.l.b16 %v223
      %v384 = vunpack.c.l.b16 %v224
      %v385 = vunpack.c.l.b16 %v225
      %v386 = vunpack.c.l.b16 %v226
      %v387 = vunpack.c.l.b16 %v227
      %v388 = vunpack.c.l.b16 %v228
      %v389 = vunpack.c.l.b16 %v229
      %v390 = vunpack.c.l.b16 %v230
      %v391 = vunpack.c.l.b16 %v231
      %v392 = vpack.c.b16 %v377, %v376
      %v393 = vpack.c.b16 %v379, %v378
      %v394 = vpack.c.b16 %v381, %v380
      %v395 = vpack.c.b16 %v383, %v382
      %v396 = vpack.c.b16 %v385, %v384
      %v397 = vpack.c.b16 %v387, %v386
      %v398 = vpack.c.b16 %v389, %v388
      %v399 = vpack.c.b16 %v391, %v390
      %408 = vmatprep.subr.bf16.mxu0 0
      %409 = vmatpush1.bf16.msra.mxu0 %v399
      %410 = vmatprep.subr.bf16.mxu0 0
      %411 = vmatpush1.bf16.msra.mxu0 %v398
      %412 = vmatprep.subr.bf16.mxu0 0
      %413 = vmatpush1.bf16.msra.mxu0 %v397
      %414 = vmatprep.subr.bf16.mxu0 0
      %415 = vmatpush1.bf16.msra.mxu0 %v396
      %416 = vmatprep.subr.bf16.mxu0 0
      %417 = vmatpush1.bf16.msra.mxu0 %v395
      %418 = vmatprep.subr.bf16.mxu0 0
      %419 = vmatpush1.bf16.msra.mxu0 %v394
      %420 = vmatprep.subr.bf16.mxu0 0
      %421 = vmatpush1.bf16.msra.mxu0 %v393
      %422 = vmatprep.subr.bf16.mxu0 0
      %423 = vmatpush1.bf16.msra.mxu0 %v392
      %424 = vmatprep.subr.bf16.mxu0 0
      %425 = vmatpush2.bf16.msra.mxu0 0
      %426 = vmatprep.subr.bf16.mxu0 0
      %427 = vmatpush2.bf16.msra.mxu0 0
      %428 = vmatprep.subr.bf16.mxu0 0
      %429 = vmatpush2.bf16.msra.mxu0 0
      %430 = vmatprep.subr.bf16.mxu0 0
      %431 = vmatpush2.bf16.msra.mxu0 0
      %432 = vmatprep.subr.bf16.mxu0 0
      %433 = vmatpush2.bf16.msra.mxu0 0
      %434 = vmatprep.subr.bf16.mxu0 0
      %435 = vmatpush2.bf16.msra.mxu0 0
      %436 = vmatprep.subr.bf16.mxu0 0
      %437 = vmatpush2.bf16.msra.mxu0 0
      %438 = vmatprep.subr.bf16.mxu0 0
      %439 = vmatpush2.bf16.msra.mxu0 0
      %440 = vmatprep.mubr.bf16.mxu0 0
      %441 = vmatmul.mubr.bf16.gmra.mxu0 %v328
      %v442 = vpop.f32.mrf.mxu0
      %v443 = vadd.f32 0.0, %v442
      %v444 = vpop.f32.mrf.mxu0
      %v445 = vpop.f32.mrf.mxu0
      %v446 = vadd.f32 0.0, %v445
      %v447 = vpop.f32.mrf.mxu0
      %448 = vmatprep.mubr.bf16.mxu0 0
      %449 = vmatmul.mubr.bf16.gmra.mxu0 %v329
      %v450 = vpop.f32.mrf.mxu0
      %v451 = vadd.f32 0.0, %v450
      %v452 = vpop.f32.mrf.mxu0
      %v453 = vpop.f32.mrf.mxu0
      %v454 = vadd.f32 0.0, %v453
      %v455 = vpop.f32.mrf.mxu0
      %456 = vmatprep.mubr.bf16.mxu0 0
      %457 = vmatmul.mubr.bf16.gmra.mxu0 %v330
      %v458 = vpop.f32.mrf.mxu0
      %v459 = vadd.f32 0.0, %v458
      %v460 = vpop.f32.mrf.mxu0
      %v461 = vpop.f32.mrf.mxu0
      %v462 = vadd.f32 0.0, %v461
      %v463 = vpop.f32.mrf.mxu0
      %464 = vmatprep.mubr.bf16.mxu0 0
      %465 = vmatmul.mubr.bf16.gmra.mxu0 %v331
      %v466 = vpop.f32.mrf.mxu0
      %v467 = vadd.f32 0.0, %v466
      %v468 = vpop.f32.mrf.mxu0
      %v469 = vpop.f32.mrf.mxu0
      %v470 = vadd.f32 0.0, %v469
      %v471 = vpop.f32.mrf.mxu0
      %472 = vmatprep.mubr.bf16.mxu0 0
      %473 = vmatmul.mubr.bf16.gmra.mxu0 %v332
      %v474 = vpop.f32.mrf.mxu0
      %v475 = vadd.f32 0.0, %v474
      %v476 = vpop.f32.mrf.mxu0
      %v477 = vpop.f32.mrf.mxu0
      %v478 = vadd.f32 0.0, %v477
      %v479 = vpop.f32.mrf.mxu0
      %480 = vmatprep.mubr.bf16.mxu0 0
      %481 = vmatmul.mubr.bf16.gmra.mxu0 %v333
      %v482 = vpop.f32.mrf.mxu0
      %v483 = vadd.f32 0.0, %v482
      %v484 = vpop.f32.mrf.mxu0
      %v485 = vpop.f32.mrf.mxu0
      %v486 = vadd.f32 0.0, %v485
      %v487 = vpop.f32.mrf.mxu0
      %488 = vmatprep.mubr.bf16.mxu0 0
      %489 = vmatmul.mubr.bf16.gmra.mxu0 %v334
      %v490 = vpop.f32.mrf.mxu0
      %v491 = vadd.f32 0.0, %v490
      %v492 = vpop.f32.mrf.mxu0
      %v493 = vpop.f32.mrf.mxu0
      %v494 = vadd.f32 0.0, %v493
      %v495 = vpop.f32.mrf.mxu0
      %496 = vmatprep.mubr.bf16.mxu0 0
      %497 = vmatmul.mubr.bf16.gmra.mxu0 %v335
      %v498 = vpop.f32.mrf.mxu0
      %v499 = vadd.f32 0.0, %v498
      %v500 = vpop.f32.mrf.mxu0
      %v501 = vpop.f32.mrf.mxu0
      %v502 = vadd.f32 0.0, %v501
      %v503 = vpop.f32.mrf.mxu0
      %504 = vmatprep.mubr.bf16.mxu0 0
      %505 = vmatmul.mubr.bf16.gmra.mxu0 %v336
      %v506 = vpop.f32.mrf.mxu0
      %v507 = vadd.f32 0.0, %v506
      %v508 = vpop.f32.mrf.mxu0
      %v509 = vpop.f32.mrf.mxu0
      %v510 = vadd.f32 0.0, %v509
      %v511 = vpop.f32.mrf.mxu0
      %512 = vmatprep.mubr.bf16.mxu0 0
      %513 = vmatmul.mubr.bf16.gmra.mxu0 %v337
      %v514 = vpop.f32.mrf.mxu0
      %v515 = vadd.f32 0.0, %v514
      %v516 = vpop.f32.mrf.mxu0
      %v517 = vpop.f32.mrf.mxu0
      %v518 = vadd.f32 0.0, %v517
      %v519 = vpop.f32.mrf.mxu0
      %520 = vmatprep.mubr.bf16.mxu0 0
      %521 = vmatmul.mubr.bf16.gmra.mxu0 %v338
      %v522 = vpop.f32.mrf.mxu0
      %v523 = vadd.f32 0.0, %v522
      %v524 = vpop.f32.mrf.mxu0
      %v525 = vpop.f32.mrf.mxu0
      %v526 = vadd.f32 0.0, %v525
      %v527 = vpop.f32.mrf.mxu0
      %528 = vmatprep.mubr.bf16.mxu0 0
      %529 = vmatmul.mubr.bf16.gmra.mxu0 %v339
      %v530 = vpop.f32.mrf.mxu0
      %v531 = vadd.f32 0.0, %v530
      %v532 = vpop.f32.mrf.mxu0
      %v533 = vpop.f32.mrf.mxu0
      %v534 = vadd.f32 0.0, %v533
      %v535 = vpop.f32.mrf.mxu0
      %536 = vmatprep.mubr.bf16.mxu0 0
      %537 = vmatmul.mubr.bf16.gmra.mxu0 %v340
      %v538 = vpop.f32.mrf.mxu0
      %v539 = vadd.f32 0.0, %v538
      %v540 = vpop.f32.mrf.mxu0
      %v541 = vpop.f32.mrf.mxu0
      %v542 = vadd.f32 0.0, %v541
      %v543 = vpop.f32.mrf.mxu0
      %544 = vmatprep.mubr.bf16.mxu0 0
      %545 = vmatmul.mubr.bf16.gmra.mxu0 %v341
      %v546 = vpop.f32.mrf.mxu0
      %v547 = vadd.f32 0.0, %v546
      %v548 = vpop.f32.mrf.mxu0
      %v549 = vpop.f32.mrf.mxu0
      %v550 = vadd.f32 0.0, %v549
      %v551 = vpop.f32.mrf.mxu0
      %552 = vmatprep.mubr.bf16.mxu0 0
      %553 = vmatmul.mubr.bf16.gmra.mxu0 %v342
      %v554 = vpop.f32.mrf.mxu0
      %v555 = vadd.f32 0.0, %v554
      %v556 = vpop.f32.mrf.mxu0
      %v557 = vpop.f32.mrf.mxu0
      %v558 = vadd.f32 0.0, %v557
      %v559 = vpop.f32.mrf.mxu0
      %560 = vmatprep.mubr.bf16.mxu0 0
      %561 = vmatmul.mubr.bf16.gmra.mxu0 %v343
      %v562 = vpop.f32.mrf.mxu0
      %v563 = vadd.f32 0.0, %v562
      %v564 = vpop.f32.mrf.mxu0
      %v565 = vpop.f32.mrf.mxu0
      %v566 = vadd.f32 0.0, %v565
      %v567 = vpop.f32.mrf.mxu0
      %568 = vdwg.mxu0
      %v569 = vmul.f32 %v443, %v443
      %v570 = vmul.f32 %v446, %v446
      %v571 = vmul.f32 %v451, %v451
      %v572 = vmul.f32 %v454, %v454
      %v573 = vmul.f32 %v459, %v459
      %v574 = vmul.f32 %v462, %v462
      %v575 = vmul.f32 %v467, %v467
      %v576 = vmul.f32 %v470, %v470
      %v577 = vmul.f32 %v475, %v475
      %v578 = vmul.f32 %v478, %v478
      %v579 = vmul.f32 %v483, %v483
      %v580 = vmul.f32 %v486, %v486
      %v581 = vmul.f32 %v491, %v491
      %v582 = vmul.f32 %v494, %v494
      %v583 = vmul.f32 %v499, %v499
      %v584 = vmul.f32 %v502, %v502
      %v585 = vmul.f32 %v507, %v507
      %v586 = vmul.f32 %v510, %v510
      %v587 = vmul.f32 %v515, %v515
      %v588 = vmul.f32 %v518, %v518
      %v589 = vmul.f32 %v523, %v523
      %v590 = vmul.f32 %v526, %v526
      %v591 = vmul.f32 %v531, %v531
      %v592 = vmul.f32 %v534, %v534
      %v593 = vmul.f32 %v539, %v539
      %v594 = vmul.f32 %v542, %v542
      %v595 = vmul.f32 %v547, %v547
      %v596 = vmul.f32 %v550, %v550
      %v597 = vmul.f32 %v555, %v555
      %v598 = vmul.f32 %v558, %v558
      %v599 = vmul.f32 %v563, %v563
      %v600 = vmul.f32 %v566, %v566
      %v601 = vadd.f32 %v569, %v585
      %v602 = vadd.f32 %v570, %v586
      %v603 = vadd.f32 %v571, %v587
      %v604 = vadd.f32 %v572, %v588
      %v605 = vadd.f32 %v573, %v589
      %v606 = vadd.f32 %v574, %v590
      %v607 = vadd.f32 %v575, %v591
      %v608 = vadd.f32 %v576, %v592
      %v609 = vadd.f32 %v577, %v593
      %v610 = vadd.f32 %v578, %v594
      %v611 = vadd.f32 %v579, %v595
      %v612 = vadd.f32 %v580, %v596
      %v613 = vadd.f32 %v581, %v597
      %v614 = vadd.f32 %v582, %v598
      %v615 = vadd.f32 %v583, %v599
      %v616 = vadd.f32 %v584, %v600
      %v617 = vadd.f32 %v601, 1.0
      %v618 = vlog2.pop %v617
      %v619 = vmul.f32 %v618, 0.6931472
      %v620 = vmul.f32 -0.5, %v601
      %v621 = vadd.f32 %v620, 1.0
      %v622 = vmul.f32 %v621, %v601
      %v623 = vand.u32 2147483647, %v601
      %vm624 = vcmp.lt.f32.partialorder %v623, 0.0004427343
      %v625 = vsel %vm624, %v622, %v619
      %v626 = vadd.f32 %v602, 1.0
      %v627 = vlog2.pop %v626
      %v628 = vmul.f32 %v627, 0.6931472
      %v629 = vmul.f32 -0.5, %v602
      %v630 = vadd.f32 %v629, 1.0
      %v631 = vmul.f32 %v630, %v602
      %v632 = vand.u32 2147483647, %v602
      %vm633 = vcmp.lt.f32.partialorder %v632, 0.0004427343
      %v634 = vsel %vm633, %v631, %v628
      %v635 = vadd.f32 %v603, 1.0
      %v636 = vlog2.pop %v635
      %v637 = vmul.f32 %v636, 0.6931472
      %v638 = vmul.f32 -0.5, %v603
      %v639 = vadd.f32 %v638, 1.0
      %v640 = vmul.f32 %v639, %v603
      %v641 = vand.u32 2147483647, %v603
      %vm642 = vcmp.lt.f32.partialorder %v641, 0.0004427343
      %v643 = vsel %vm642, %v640, %v637
      %v644 = vadd.f32 %v604, 1.0
      %v645 = vlog2.pop %v644
      %v646 = vmul.f32 %v645, 0.6931472
      %v647 = vmul.f32 -0.5, %v604
      %v648 = vadd.f32 %v647, 1.0
      %v649 = vmul.f32 %v648, %v604
      %v650 = vand.u32 2147483647, %v604
      %vm651 = vcmp.lt.f32.partialorder %v650, 0.0004427343
      %v652 = vsel %vm651, %v649, %v646
      %v653 = vadd.f32 %v605, 1.0
      %v654 = vlog2.pop %v653
      %v655 = vmul.f32 %v654, 0.6931472
      %v656 = vmul.f32 -0.5, %v605
      %v657 = vadd.f32 %v656, 1.0
      %v658 = vmul.f32 %v657, %v605
      %v659 = vand.u32 2147483647, %v605
      %vm660 = vcmp.lt.f32.partialorder %v659, 0.0004427343
      %v661 = vsel %vm660, %v658, %v655
      %v662 = vadd.f32 %v606, 1.0
      %v663 = vlog2.pop %v662
      %v664 = vmul.f32 %v663, 0.6931472
      %v665 = vmul.f32 -0.5, %v606
      %v666 = vadd.f32 %v665, 1.0
      %v667 = vmul.f32 %v666, %v606
      %v668 = vand.u32 2147483647, %v606
      %vm669 = vcmp.lt.f32.partialorder %v668, 0.0004427343
      %v670 = vsel %vm669, %v667, %v664
      %v671 = vadd.f32 %v607, 1.0
      %v672 = vlog2.pop %v671
      %v673 = vmul.f32 %v672, 0.6931472
      %v674 = vmul.f32 -0.5, %v607
      %v675 = vadd.f32 %v674, 1.0
      %v676 = vmul.f32 %v675, %v607
      %v677 = vand.u32 2147483647, %v607
      %vm678 = vcmp.lt.f32.partialorder %v677, 0.0004427343
      %v679 = vsel %vm678, %v676, %v673
      %v680 = vadd.f32 %v608, 1.0
      %v681 = vlog2.pop %v680
      %v682 = vmul.f32 %v681, 0.6931472
      %v683 = vmul.f32 -0.5, %v608
      %v684 = vadd.f32 %v683, 1.0
      %v685 = vmul.f32 %v684, %v608
      %v686 = vand.u32 2147483647, %v608
      %vm687 = vcmp.lt.f32.partialorder %v686, 0.0004427343
      %v688 = vsel %vm687, %v685, %v682
      %v689 = vadd.f32 %v609, 1.0
      %v690 = vlog2.pop %v689
      %v691 = vmul.f32 %v690, 0.6931472
      %v692 = vmul.f32 -0.5, %v609
      %v693 = vadd.f32 %v692, 1.0
      %v694 = vmul.f32 %v693, %v609
      %v695 = vand.u32 2147483647, %v609
      %vm696 = vcmp.lt.f32.partialorder %v695, 0.0004427343
      %v697 = vsel %vm696, %v694, %v691
      %v698 = vadd.f32 %v610, 1.0
      %v699 = vlog2.pop %v698
      %v700 = vmul.f32 %v699, 0.6931472
      %v701 = vmul.f32 -0.5, %v610
      %v702 = vadd.f32 %v701, 1.0
      %v703 = vmul.f32 %v702, %v610
      %v704 = vand.u32 2147483647, %v610
      %vm705 = vcmp.lt.f32.partialorder %v704, 0.0004427343
      %v706 = vsel %vm705, %v703, %v700
      %v707 = vadd.f32 %v611, 1.0
      %v708 = vlog2.pop %v707
      %v709 = vmul.f32 %v708, 0.6931472
      %v710 = vmul.f32 -0.5, %v611
      %v711 = vadd.f32 %v710, 1.0
      %v712 = vmul.f32 %v711, %v611
      %v713 = vand.u32 2147483647, %v611
      %vm714 = vcmp.lt.f32.partialorder %v713, 0.0004427343
      %v715 = vsel %vm714, %v712, %v709
      %v716 = vadd.f32 %v612, 1.0
      %v717 = vlog2.pop %v716
      %v718 = vmul.f32 %v717, 0.6931472
      %v719 = vmul.f32 -0.5, %v612
      %v720 = vadd.f32 %v719, 1.0
      %v721 = vmul.f32 %v720, %v612
      %v722 = vand.u32 2147483647, %v612
      %vm723 = vcmp.lt.f32.partialorder %v722, 0.0004427343
      %v724 = vsel %vm723, %v721, %v718
      %v725 = vadd.f32 %v613, 1.0
      %v726 = vlog2.pop %v725
      %v727 = vmul.f32 %v726, 0.6931472
      %v728 = vmul.f32 -0.5, %v613
      %v729 = vadd.f32 %v728, 1.0
      %v730 = vmul.f32 %v729, %v613
      %v731 = vand.u32 2147483647, %v613
      %vm732 = vcmp.lt.f32.partialorder %v731, 0.0004427343
      %v733 = vsel %vm732, %v730, %v727
      %v734 = vadd.f32 %v614, 1.0
      %v735 = vlog2.pop %v734
      %v736 = vmul.f32 %v735, 0.6931472
      %v737 = vmul.f32 -0.5, %v614
      %v738 = vadd.f32 %v737, 1.0
      %v739 = vmul.f32 %v738, %v614
      %v740 = vand.u32 2147483647, %v614
      %vm741 = vcmp.lt.f32.partialorder %v740, 0.0004427343
      %v742 = vsel %vm741, %v739, %v736
      %v743 = vadd.f32 %v615, 1.0
      %v744 = vlog2.pop %v743
      %v745 = vmul.f32 %v744, 0.6931472
      %v746 = vmul.f32 -0.5, %v615
      %v747 = vadd.f32 %v746, 1.0
      %v748 = vmul.f32 %v747, %v615
      %v749 = vand.u32 2147483647, %v615
      %vm750 = vcmp.lt.f32.partialorder %v749, 0.0004427343
      %v751 = vsel %vm750, %v748, %v745
      %v752 = vadd.f32 %v616, 1.0
      %v753 = vlog2.pop %v752
      %v754 = vmul.f32 %v753, 0.6931472
      %v755 = vmul.f32 -0.5, %v616
      %v756 = vadd.f32 %v755, 1.0
      %v757 = vmul.f32 %v756, %v616
      %v758 = vand.u32 2147483647, %v616
      %vm759 = vcmp.lt.f32.partialorder %v758, 0.0004427343
      %v760 = vsel %vm759, %v757, %v754
      %v761 = vlaneseq
      %v762 = vand.u32 %v761, 127
      %s763 = smul.u32 %s20, 128
      %v764 = vstv %s763
      %v765 = vadd.s32 %v762, %v764
      %vm766 = vcmp.lt.s32.totalorder %v765, 9
      %v767 = vadd.f32 %v625, %v634
      %v768 = vadd.f32 %v767, %v643
      %v769 = vadd.f32 %v768, %v652
      %v770 = vadd.f32 %v769, %v661
      %v771 = vadd.f32 %v770, %v670
      %v772 = vadd.f32 %v771, %v679
      %v773 = vadd.f32 %v772, %v688
      %v774 = vadd.f32 %v773, %v697
      %v775 = vadd.f32 %v774, %v706
      %v776 = vadd.f32 %v775, %v715
      %v777 = vadd.f32 %v776, %v724
      %v778 = vadd.f32 %v777, %v733
      %v779 = vadd.f32 %v778, %v742
      %v780 = vadd.f32 %v779, %v751
      %v781 = vadd.f32 %v780, %v760
      %v782 = vrot.slane %v781, 4
      %v783 = vadd.f32 %v781, %v782
      %v784 = vrot.slane %v783, 2
      %v785 = vadd.f32 %v783, %v784
      %v786 = vrot.slane %v785, 1
      %v787 = vadd.f32 %v785, %v786
      %v788 = vsel %vm766, %v787, 0.0
      %789 = vst [vmem:[%s208] sm:$0x1] %v788
      %v790 = vmul.f32 %v625, %v625
      %v791 = vmul.f32 %v634, %v634
      %v792 = vmul.f32 %v643, %v643
      %v793 = vmul.f32 %v652, %v652
      %v794 = vmul.f32 %v661, %v661
      %v795 = vmul.f32 %v670, %v670
      %v796 = vmul.f32 %v679, %v679
      %v797 = vmul.f32 %v688, %v688
      %v798 = vmul.f32 %v697, %v697
      %v799 = vmul.f32 %v706, %v706
      %v800 = vmul.f32 %v715, %v715
      %v801 = vmul.f32 %v724, %v724
      %v802 = vmul.f32 %v733, %v733
      %v803 = vmul.f32 %v742, %v742
      %v804 = vmul.f32 %v751, %v751
      %v805 = vmul.f32 %v760, %v760
      %v806 = vadd.f32 %v790, %v791
      %v807 = vadd.f32 %v806, %v792
      %v808 = vadd.f32 %v807, %v793
      %v809 = vadd.f32 %v808, %v794
      %v810 = vadd.f32 %v809, %v795
      %v811 = vadd.f32 %v810, %v796
      %v812 = vadd.f32 %v811, %v797
      %v813 = vadd.f32 %v812, %v798
      %v814 = vadd.f32 %v813, %v799
      %v815 = vadd.f32 %v814, %v800
      %v816 = vadd.f32 %v815, %v801
      %v817 = vadd.f32 %v816, %v802
      %v818 = vadd.f32 %v817, %v803
      %v819 = vadd.f32 %v818, %v804
      %v820 = vadd.f32 %v819, %v805
      %v821 = vrot.slane %v820, 4
      %v822 = vadd.f32 %v820, %v821
      %v823 = vrot.slane %v822, 2
      %v824 = vadd.f32 %v822, %v823
      %v825 = vrot.slane %v824, 1
      %v826 = vadd.f32 %v824, %v825
      %v827 = vsel %vm766, %v826, 0.0
      %828 = vst [vmem:[%s214] sm:$0x1] %v827
      %p829 = scmp.lt.s32.totalorder %s19, 1
      %s830 = scalar_select %p829, %s19, 1
      %p831 = scmp.lt.s32.totalorder %s20, 0
      %s832 = scalar_select %p831, %s20, 0
      %s833 = sadd.s32 %s832, %s830
      %s834 = scalar_lea.vmem %s2, %s833
      %p835 = scmp.lt.s32.totalorder %s19, 1
      %s836 = scalar_select %p835, %s19, 1
      %p837 = scmp.lt.s32.totalorder %s20, 0
      %s838 = scalar_select %p837, %s20, 0
      %s839 = sadd.s32 %s838, %s836
      %s840 = scalar_lea.vmem %s3, %s839
      // Predicated region
      $region29: #{deepspeech_feature_extractor.2} parent=27 // pred_check
        %p841 = pneg %p96
      $region30: #{deepspeech_feature_extractor.2} parent=27 // pred_check_branch
        %843 = sbr.rel (%p841) target = $region32
      $region31: #{deepspeech_feature_extractor.2} parent=27 // pred_region
        _
      $region32: #{deepspeech_feature_extractor.2} parent=27 // pred_fallthru
        _
      // Predicated region
      $region33: #{deepspeech_feature_extractor.2} parent=27 // pred_check
        %p844 = pneg %p124
      $region34: #{deepspeech_feature_extractor.2} parent=27 // pred_check_branch
        %846 = sbr.rel (%p844) target = $region36
      $region35: #{deepspeech_feature_extractor.2} parent=27 // pred_region
        _
      $region36: #{deepspeech_feature_extractor.2} parent=27 // pred_fallthru
        _
    $region28: #{deepspeech_feature_extractor.2} parent=5 // pred_fallthru
      _
    %p847 = scmp.le.s32.totalorder 2, %s10
    // Predicated region
    $region37: #{deepspeech_feature_extractor.2} parent=5 // pred_check
      %p848 = pneg %p847
    $region38: #{deepspeech_feature_extractor.2} parent=5 // pred_check_branch
      %850 = sbr.rel (%p848) target = $region40
    $region39: #{deepspeech_feature_extractor.2} parent=5 // pred_region
      %s851 = ssub.s32 %s10, 2
      // Predicated region
      $region41: #{deepspeech_feature_extractor.2} parent=39 // pred_check
        %p852 = pneg %p102
      $region42: #{deepspeech_feature_extractor.2} parent=39 // pred_check_branch
        %854 = sbr.rel (%p852) target = $region44
      $region43: #{deepspeech_feature_extractor.2} parent=39 // pred_region
        %p855 = scmp.lt.s32.totalorder %s21, 1
        %s856 = scalar_select %p855, %s21, 1
        %p857 = scmp.lt.s32.totalorder %s22, 0
        %s858 = scalar_select %p857, %s22, 0
        %s859 = sadd.s32 %s858, %s856
        %s860 = scalar_lea.vmem %s2, %s859
      $region44: #{deepspeech_feature_extractor.2} parent=39 // pred_fallthru
        _
      // Predicated region
      $region45: #{deepspeech_feature_extractor.2} parent=39 // pred_check
        %p861 = pneg %p130
      $region46: #{deepspeech_feature_extractor.2} parent=39 // pred_check_branch
        %863 = sbr.rel (%p861) target = $region48
      $region47: #{deepspeech_feature_extractor.2} parent=39 // pred_region
        %p864 = scmp.lt.s32.totalorder %s21, 1
        %s865 = scalar_select %p864, %s21, 1
        %p866 = scmp.lt.s32.totalorder %s22, 0
        %s867 = scalar_select %p866, %s22, 0
        %s868 = sadd.s32 %s867, %s865
        %s869 = scalar_lea.vmem %s3, %s868
      $region48: #{deepspeech_feature_extractor.2} parent=39 // pred_fallthru
        _
    $region40: #{deepspeech_feature_extractor.2} parent=5 // pred_fallthru
      _
  $region6: #{deepspeech_feature_extractor.2} parent=0 // loop_footer
    %s14 = sadd.s32 1, %s10
  $region7: #{deepspeech_feature_extractor.2} parent=0 // loop_footer_branch
    %9 = sbr.rel target = $region3
  $region8: #{deepspeech_feature_extractor.2} parent=0 // loop_exit
    _

// kernel: deepspeech_feature_extractor.3
$region0: #{deepspeech_feature_extractor.3}
  #allocation0 [shape = 'u32[]', space=smem, size = 0x4, offset = 0x4, fixed_abs, tag = 'smem constant byte address 0x4 - core index']
  #allocation1 [shape = 'u32[144,128]{1,0:T(1,128)}', space=vmem, size = 0x12000, scoped, tag = 'internal scratch']
  #allocation2 [shape = 'f32[1,1]{1,0:T(1,128)S(1)}', space=vmem, size = 0x200, scoped, tag = 'scoped memory for deepspeech_feature_extractor.3']
  #allocation3 [shape = 'f32[1,1]{1,0:T(1,128)S(1)}', space=vmem, size = 0x200, scoped, tag = 'scoped memory for deepspeech_feature_extractor.3']
  %s0 = inlined_call_operand.vmem [shape: bf16[2,128,128], index: 0, kind: input, shape index: {}]
  %s1 = inlined_call_operand.vmem [shape: bf16[256,128], index: 1, kind: input, shape index: {}]
  %s2 = inlined_call_operand.<no memory space> [shape: f32[1,1], index: 2, kind: input, shape index: {}]
  %s3 = inlined_call_operand.<no memory space> [shape: f32[1,1], index: 3, kind: input, shape index: {}]
  %s4 = inlined_call_operand.vmem [shape: f32[2,65,9], index: 4, kind: output, shape index: {}]
  %s5 = sld [smem:[#allocation0]]
  $region49: #{deepspeech_feature_extractor.3} parent=0
    _
  %s7 = ssub.s32 1, %s5
  %s8 = scalar_select 0, %s7, %s5
  %v9 = vstv %s2
  %10 = vst [vmem:[#allocation2] sm:$0x1] %v9
  %v11 = vstv %s3
  %12 = vst [vmem:[#allocation3] sm:$0x1] %v11
  loop: start=0, step=1, limit=4
  $region2: #{deepspeech_feature_extractor.3} parent=0 // loop_pre_header
    _
  $region3: #{deepspeech_feature_extractor.3} parent=0 // loop_header
    %s14 = sphi 0, %s18
    %p15 = scmp.ge.s32.totalorder %s14, 4
    %s21 = sphi 0, %s33
    %s22 = sphi 0, %s29
    %s23 = sphi 0, %s21
    %s24 = sphi 0, %s22
    %s25 = sphi 0, %s23
    %s26 = sphi 0, %s24
    %s38 = sphi 0, %s40
    %s41 = sphi 0, %s38
    %s42 = sphi 0, %s41
    %s58 = sphi 0, %s42
    %s62 = sphi 0, %s62
    %s64 = sphi 0, %s62
    %s65 = sphi 0, %s64
    %s79 = sphi 0, %s65
    %s83 = sphi 0, %s83
    %s85 = sphi 0, %s83
    %s86 = sphi 0, %s85
    %s100 = sphi 0, %s86
    %s104 = sphi 0, %s104
    %s106 = sphi 0, %s104
    %s107 = sphi 0, %s106
    %s121 = sphi 0, %s107
    %s129 = sphi 0, %s131
    %s132 = sphi 0, %s129
    %s133 = sphi 0, %s132
    %s149 = sphi 0, %s133
  $region4: #{deepspeech_feature_extractor.3} parent=0 // loop_header_branch
    %17 = sbr.rel (%p15) target = $region8
  $region5: #{deepspeech_feature_extractor.3} parent=0 // loop_body
    %s19 = ssub.s32 %s14, 1
    %s20 = ssub.s32 %s14, 2
    %s27 = sadd.s32 1, %s22
    %p28 = scmp.ge.s32.totalorder %s27, 1
    %s29 = scalar_select %p28, 0, %s27
    %s30 = sadd.s32 1, %s21
    %s31 = scalar_select %p28, %s30, %s21
    %p32 = scmp.ge.s32.totalorder %s31, 2
    %s33 = scalar_select %p32, 0, %s31
    %s34 = ssub.s32 %s21, %s33
    %s35 = ssub.s32 %s22, %s29
    %s36 = sor.u32 %s34, %s35
    %p37 = scmp.eq.s32.totalorder %s36, 0
    %s39 = sadd.s32 %s38, 1
    %s40 = scalar_select %p37, %s38, %s39
    %p43 = pneg %p37
    %p44 = scmp.eq.s32.totalorder %s14, 1
    %p45 = por %p43, %p44
    %p46 = scmp.ne.s32.totalorder %s38, %s41
    %p47 = scmp.eq.s32.totalorder %s14, 0
    %p48 = por %p46, %p47
    %p49 = scmp.ne.s32.totalorder %s38, %s41
    %p50 = scmp.eq.s32.totalorder %s19, 1
    %p51 = por %p49, %p50
    %p52 = scmp.ne.s32.totalorder %s41, %s42
    %p53 = scmp.eq.s32.totalorder %s19, 0
    %p54 = por %p52, %p53
    %p55 = scmp.ne.s32.totalorder %s41, %s42
    %p56 = scmp.eq.s32.totalorder %s20, 1
    %p57 = por %p55, %p56
    %p59 = scmp.ne.s32.totalorder %s42, %s58
    %p60 = scmp.eq.s32.totalorder %s20, 0
    %p61 = por %p59, %p60
    %s63 = sadd.s32 %s62, 1
    %p66 = scmp.eq.s32.totalorder %s14, 1
    %p67 = scmp.ne.s32.totalorder %s62, %s64
    %p68 = scmp.eq.s32.totalorder %s14, 0
    %p69 = por %p67, %p68
    %p70 = scmp.ne.s32.totalorder %s62, %s64
    %p71 = scmp.eq.s32.totalorder %s19, 1
    %p72 = por %p70, %p71
    %p73 = scmp.ne.s32.totalorder %s64, %s65
    %p74 = scmp.eq.s32.totalorder %s19, 0
    %p75 = por %p73, %p74
    %p76 = scmp.ne.s32.totalorder %s64, %s65
    %p77 = scmp.eq.s32.totalorder %s20, 1
    %p78 = por %p76, %p77
    %p80 = scmp.ne.s32.totalorder %s65, %s79
    %p81 = scmp.eq.s32.totalorder %s20, 0
    %p82 = por %p80, %p81
    %s84 = sadd.s32 %s83, 1
    %p87 = scmp.eq.s32.totalorder %s14, 1
    %p88 = scmp.ne.s32.totalorder %s83, %s85
    %p89 = scmp.eq.s32.totalorder %s14, 0
    %p90 = por %p88, %p89
    %p91 = scmp.ne.s32.totalorder %s83, %s85
    %p92 = scmp.eq.s32.totalorder %s19, 1
    %p93 = por %p91, %p92
    %p94 = scmp.ne.s32.totalorder %s85, %s86
    %p95 = scmp.eq.s32.totalorder %s19, 0
    %p96 = por %p94, %p95
    %p97 = scmp.ne.s32.totalorder %s85, %s86
    %p98 = scmp.eq.s32.totalorder %s20, 1
    %p99 = por %p97, %p98
    %p101 = scmp.ne.s32.totalorder %s86, %s100
    %p102 = scmp.eq.s32.totalorder %s20, 0
    %p103 = por %p101, %p102
    %s105 = sadd.s32 %s104, 1
    %p108 = scmp.eq.s32.totalorder %s14, 1
    %p109 = scmp.ne.s32.totalorder %s104, %s106
    %p110 = scmp.eq.s32.totalorder %s14, 0
    %p111 = por %p109, %p110
    %p112 = scmp.ne.s32.totalorder %s104, %s106
    %p113 = scmp.eq.s32.totalorder %s19, 1
    %p114 = por %p112, %p113
    %p115 = scmp.ne.s32.totalorder %s106, %s107
    %p116 = scmp.eq.s32.totalorder %s19, 0
    %p117 = por %p115, %p116
    %p118 = scmp.ne.s32.totalorder %s106, %s107
    %p119 = scmp.eq.s32.totalorder %s20, 1
    %p120 = por %p118, %p119
    %p122 = scmp.ne.s32.totalorder %s107, %s121
    %p123 = scmp.eq.s32.totalorder %s20, 0
    %p124 = por %p122, %p123
    %s125 = ssub.s32 %s21, %s33
    %s126 = ssub.s32 %s22, %s29
    %s127 = sor.u32 %s125, %s126
    %p128 = scmp.eq.s32.totalorder %s127, 0
    %s130 = sadd.s32 %s129, 1
    %s131 = scalar_select %p128, %s129, %s130
    %p134 = pneg %p128
    %p135 = scmp.eq.s32.totalorder %s14, 1
    %p136 = por %p134, %p135
    %p137 = scmp.ne.s32.totalorder %s129, %s132
    %p138 = scmp.eq.s32.totalorder %s14, 0
    %p139 = por %p137, %p138
    %p140 = scmp.ne.s32.totalorder %s129, %s132
    %p141 = scmp.eq.s32.totalorder %s19, 1
    %p142 = por %p140, %p141
    %p143 = scmp.ne.s32.totalorder %s132, %s133
    %p144 = scmp.eq.s32.totalorder %s19, 0
    %p145 = por %p143, %p144
    %p146 = scmp.ne.s32.totalorder %s132, %s133
    %p147 = scmp.eq.s32.totalorder %s20, 1
    %p148 = por %p146, %p147
    %p150 = scmp.ne.s32.totalorder %s133, %s149
    %p151 = scmp.eq.s32.totalorder %s20, 0
    %p152 = por %p150, %p151
    %p153 = scmp.le.s32.totalorder 1, %s14
    %p154 = scmp.lt.s32.totalorder %s14, 3
    %p155 = pnand %p153, %p154
    %p156 = pneg %p155
    // Predicated region
    $region9: #{deepspeech_feature_extractor.3} parent=5 // pred_check
      _
    $region10: #{deepspeech_feature_extractor.3} parent=5 // pred_check_branch
      %158 = sbr.rel (%p155) target = $region12
    $region11: #{deepspeech_feature_extractor.3} parent=5 // pred_region
      %s159 = ssub.s32 %s14, 1
      // Predicated region
      $region13: #{deepspeech_feature_extractor.3} parent=11 // pred_check
        %p160 = pneg %p75
      $region14: #{deepspeech_feature_extractor.3} parent=11 // pred_check_branch
        %162 = sbr.rel (%p160) target = $region16
      $region15: #{deepspeech_feature_extractor.3} parent=11 // pred_region
        _
      $region16: #{deepspeech_feature_extractor.3} parent=11 // pred_fallthru
        _
      // Predicated region
      $region17: #{deepspeech_feature_extractor.3} parent=11 // pred_check
        %p163 = pneg %p96
      $region18: #{deepspeech_feature_extractor.3} parent=11 // pred_check_branch
        %165 = sbr.rel (%p163) target = $region20
      $region19: #{deepspeech_feature_extractor.3} parent=11 // pred_region
        _
      $region20: #{deepspeech_feature_extractor.3} parent=11 // pred_fallthru
        _
      // Predicated region
      $region21: #{deepspeech_feature_extractor.3} parent=11 // pred_check
        %p166 = pneg %p117
      $region22: #{deepspeech_feature_extractor.3} parent=11 // pred_check_branch
        %168 = sbr.rel (%p166) target = $region24
      $region23: #{deepspeech_feature_extractor.3} parent=11 // pred_region
        _
      $region24: #{deepspeech_feature_extractor.3} parent=11 // pred_fallthru
        _
    $region12: #{deepspeech_feature_extractor.3} parent=5 // pred_fallthru
      _
    %p169 = scmp.lt.s32.totalorder %s14, 2
    // Predicated region
    $region25: #{deepspeech_feature_extractor.3} parent=5 // pred_check
      %p170 = pneg %p169
    $region26: #{deepspeech_feature_extractor.3} parent=5 // pred_check_branch
      %172 = sbr.rel (%p170) target = $region28
    $region27: #{deepspeech_feature_extractor.3} parent=5 // pred_region
      // Predicated region
      $region29: #{deepspeech_feature_extractor.3} parent=27 // pred_check
        %p173 = pneg %p48
      $region30: #{deepspeech_feature_extractor.3} parent=27 // pred_check_branch
        %175 = sbr.rel (%p173) target = $region32
      $region31: #{deepspeech_feature_extractor.3} parent=27 // pred_region
        %p176 = scmp.lt.s32.totalorder %s21, 1
        %s177 = scalar_select %p176, %s21, 1
        %p178 = scmp.lt.s32.totalorder %s22, 0
        %s179 = scalar_select %p178, %s22, 0
        %s180 = smul.addr %s177, 16
        %s181 = sadd.s32 %s179, %s180
        %s182 = smul.addr %s181, 4
        %s183 = scalar_lea.vmem %s0, %s182
      $region32: #{deepspeech_feature_extractor.3} parent=27 // pred_fallthru
        _
    $region28: #{deepspeech_feature_extractor.3} parent=5 // pred_fallthru
      _
    %p184 = scmp.le.s32.totalorder 1, %s14
    %p185 = scmp.lt.s32.totalorder %s14, 3
    %p186 = pnand %p184, %p185
    %p187 = pneg %p186
    // Predicated region
    $region33: #{deepspeech_feature_extractor.3} parent=5 // pred_check
      _
    $region34: #{deepspeech_feature_extractor.3} parent=5 // pred_check_branch
      %189 = sbr.rel (%p186) target = $region36
    $region35: #{deepspeech_feature_extractor.3} parent=5 // pred_region
      %s190 = ssub.s32 %s14, 1
      %p191 = scmp.lt.s32.totalorder %s23, 1
      %s192 = scalar_select %p191, %s23, 1
      %p193 = scmp.lt.s32.totalorder %s24, 0
      %s194 = scalar_select %p193, %s24, 0
      %s195 = smul.addr %s192, 16
      %s196 = sadd.s32 %s194, %s195
      %s197 = smul.addr %s196, 4
      %s198 = scalar_lea.vmem %s0, %s197
      %p199 = pneg %p54
      %p200 = pneg %p51
      %p201 = pneg %p75
      %p202 = pneg %p72
      %p203 = pneg %p96
      %p204 = pneg %p93
      %p205 = pneg %p117
      %p206 = pneg %p114
      %p207 = pneg %p145
      %p208 = pneg %p142
      %p209 = scmp.lt.s32.totalorder %s23, 1
      %s210 = scalar_select %p209, %s23, 1
      %p211 = scmp.lt.s32.totalorder %s24, 0
      %s212 = scalar_select %p211, %s24, 0
      %s213 = smul.addr %s210, 9
      %s214 = sadd.s32 %s212, %s213
      %s215 = smul.addr %s214, 8
      %s216 = scalar_lea.vmem %s4, %s215
      %p217 = scmp.lt.s32.totalorder %s23, 1
      %s218 = scalar_select %p217, %s23, 1
      %p219 = scmp.lt.s32.totalorder %s24, 0
      %s220 = scalar_select %p219, %s24, 0
      %s221 = smul.addr %s218, 16
      %s222 = sadd.s32 %s220, %s221
      %s223 = smul.addr %s222, 4
      %s224 = scalar_lea.vmem %s0, %s223
      %p225 = scmp.lt.s32.totalorder %s23, 1
      %s226 = scalar_select %p225, %s23, 1
      %p227 = scmp.lt.s32.totalorder %s24, 0
      %s228 = scalar_select %p227, %s24, 0
      %s229 = smul.addr %s226, 9
      %s230 = sadd.s32 %s228, %s229
      %s231 = smul.addr %s230, 8
      %s232 = scalar_lea.vmem %s4, %s231
      %v234 = vld [vmem:[%s224] sm:$0xf]
      %v235 = vld [vmem:[%s224 + $0x4] sm:$0xf]
      %v236 = vld [vmem:[%s224 + $0x8] sm:$0xf]
      %v237 = vld [vmem:[%s224 + $0xc] sm:$0xf]
      %v238 = vld [vmem:[%s224 + $0x10] sm:$0xf]
      %v239 = vld [vmem:[%s224 + $0x14] sm:$0xf]
      %v240 = vld [vmem:[%s224 + $0x18] sm:$0xf]
      %v241 = vld [vmem:[%s224 + $0x1c] sm:$0xf]
      %v242 = vld [vmem:[%s224 + $0x20] sm:$0xf]
      %v243 = vld [vmem:[%s224 + $0x24] sm:$0xf]
      %v244 = vld [vmem:[%s224 + $0x28] sm:$0xf]
      %v245 = vld [vmem:[%s224 + $0x2c] sm:$0xf]
      %v246 = vld [vmem:[%s224 + $0x30] sm:$0xf]
      %v247 = vld [vmem:[%s224 + $0x34] sm:$0xf]
      %v248 = vld [vmem:[%s224 + $0x38] sm:$0xf]
      %v249 = vld [vmem:[%s224 + $0x3c] sm:$0xf]
      %v250 = vld [vmem:[%s1] sm:$0xf]
      %v251 = vld [vmem:[%s1 + $0x4] sm:$0xf]
      %v252 = vld [vmem:[%s1 + $0x8] sm:$0xf]
      %v253 = vld [vmem:[%s1 + $0xc] sm:$0xf]
      %v254 = vld [vmem:[%s1 + $0x10] sm:$0xf]
      %v255 = vld [vmem:[%s1 + $0x14] sm:$0xf]
      %v256 = vld [vmem:[%s1 + $0x18] sm:$0xf]
      %v257 = vld [vmem:[%s1 + $0x1c] sm:$0xf]
      %v258 = vld [vmem:[%s1 + $0x20] sm:$0xf]
      %v259 = vld [vmem:[%s1 + $0x24] sm:$0xf]
      %v260 = vld [vmem:[%s1 + $0x28] sm:$0xf]
      %v261 = vld [vmem:[%s1 + $0x2c] sm:$0xf]
      %v262 = vld [vmem:[%s1 + $0x30] sm:$0xf]
      %v263 = vld [vmem:[%s1 + $0x34] sm:$0xf]
      %v264 = vld [vmem:[%s1 + $0x38] sm:$0xf]
      %v265 = vld [vmem:[%s1 + $0x3c] sm:$0xf]
      %v266 = vld [vmem:[%s1 + $0x40] sm:$0xf]
      %v267 = vld [vmem:[%s1 + $0x44] sm:$0xf]
      %v268 = vld [vmem:[%s1 + $0x48] sm:$0xf]
      %v269 = vld [vmem:[%s1 + $0x4c] sm:$0xf]
      %v270 = vld [vmem:[%s1 + $0x50] sm:$0xf]
      %v271 = vld [vmem:[%s1 + $0x54] sm:$0xf]
      %v272 = vld [vmem:[%s1 + $0x58] sm:$0xf]
      %v273 = vld [vmem:[%s1 + $0x5c] sm:$0xf]
      %v274 = vld [vmem:[%s1 + $0x60] sm:$0xf]
      %v275 = vld [vmem:[%s1 + $0x64] sm:$0xf]
      %v276 = vld [vmem:[%s1 + $0x68] sm:$0xf]
      %v277 = vld [vmem:[%s1 + $0x6c] sm:$0xf]
      %v278 = vld [vmem:[%s1 + $0x70] sm:$0xf]
      %v279 = vld [vmem:[%s1 + $0x74] sm:$0xf]
      %v280 = vld [vmem:[%s1 + $0x78] sm:$0xf]
      %v281 = vld [vmem:[%s1 + $0x7c] sm:$0xf]
      %v314 = vunpack.c.l.b16 %v250
      %v315 = vunpack.c.l.b16 %v251
      %v316 = vunpack.c.l.b16 %v252
      %v317 = vunpack.c.l.b16 %v253
      %v318 = vunpack.c.l.b16 %v254
      %v319 = vunpack.c.l.b16 %v255
      %v320 = vunpack.c.l.b16 %v256
      %v321 = vunpack.c.l.b16 %v257
      %v322 = vunpack.c.l.b16 %v258
      %v323 = vunpack.c.l.b16 %v259
      %v324 = vunpack.c.l.b16 %v260
      %v325 = vunpack.c.l.b16 %v261
      %v326 = vunpack.c.l.b16 %v262
      %v327 = vunpack.c.l.b16 %v263
      %v328 = vunpack.c.l.b16 %v264
      %v329 = vunpack.c.l.b16 %v265
      %v330 = vunpack.c.l.b16 %v266
      %v331 = vunpack.c.l.b16 %v267
      %v332 = vunpack.c.l.b16 %v268
      %v333 = vunpack.c.l.b16 %v269
      %v334 = vunpack.c.l.b16 %v270
      %v335 = vunpack.c.l.b16 %v271
      %v336 = vunpack.c.l.b16 %v272
      %v337 = vunpack.c.l.b16 %v273
      %v338 = vunpack.c.l.b16 %v274
      %v339 = vunpack.c.l.b16 %v275
      %v340 = vunpack.c.l.b16 %v276
      %v341 = vunpack.c.l.b16 %v277
      %v342 = vunpack.c.l.b16 %v278
      %v343 = vunpack.c.l.b16 %v279
      %v344 = vunpack.c.l.b16 %v280
      %v345 = vunpack.c.l.b16 %v281
      %v346 = vpack.c.b16 %v315, %v314
      %v347 = vpack.c.b16 %v317, %v316
      %v348 = vpack.c.b16 %v319, %v318
      %v349 = vpack.c.b16 %v321, %v320
      %v350 = vpack.c.b16 %v323, %v322
      %v351 = vpack.c.b16 %v325, %v324
      %v352 = vpack.c.b16 %v327, %v326
      %v353 = vpack.c.b16 %v329, %v328
      %v354 = vpack.c.b16 %v331, %v330
      %v355 = vpack.c.b16 %v333, %v332
      %v356 = vpack.c.b16 %v335, %v334
      %v357 = vpack.c.b16 %v337, %v336
      %v358 = vpack.c.b16 %v339, %v338
      %v359 = vpack.c.b16 %v341, %v340
      %v360 = vpack.c.b16 %v343, %v342
      %v361 = vpack.c.b16 %v345, %v344
      %v394 = vunpack.c.l.b16 %v234
      %v395 = vunpack.c.l.b16 %v235
      %v396 = vunpack.c.l.b16 %v236
      %v397 = vunpack.c.l.b16 %v237
      %v398 = vunpack.c.l.b16 %v238
      %v399 = vunpack.c.l.b16 %v239
      %v400 = vunpack.c.l.b16 %v240
      %v401 = vunpack.c.l.b16 %v241
      %v402 = vunpack.c.l.b16 %v242
      %v403 = vunpack.c.l.b16 %v243
      %v404 = vunpack.c.l.b16 %v244
      %v405 = vunpack.c.l.b16 %v245
      %v406 = vunpack.c.l.b16 %v246
      %v407 = vunpack.c.l.b16 %v247
      %v408 = vunpack.c.l.b16 %v248
      %v409 = vunpack.c.l.b16 %v249
      %v410 = vpack.c.b16 %v395, %v394
      %v411 = vpack.c.b16 %v397, %v396
      %v412 = vpack.c.b16 %v399, %v398
      %v413 = vpack.c.b16 %v401, %v400
      %v414 = vpack.c.b16 %v403, %v402
      %v415 = vpack.c.b16 %v405, %v404
      %v416 = vpack.c.b16 %v407, %v406
      %v417 = vpack.c.b16 %v409, %v408
      %426 = vmatprep.subr.bf16.mxu0 0
      %427 = vmatpush1.bf16.msra.mxu0 %v417
      %428 = vmatprep.subr.bf16.mxu0 0
      %429 = vmatpush1.bf16.msra.mxu0 %v416
      %430 = vmatprep.subr.bf16.mxu0 0
      %431 = vmatpush1.bf16.msra.mxu0 %v415
      %432 = vmatprep.subr.bf16.mxu0 0
      %433 = vmatpush1.bf16.msra.mxu0 %v414
      %434 = vmatprep.subr.bf16.mxu0 0
      %435 = vmatpush1.bf16.msra.mxu0 %v413
      %436 = vmatprep.subr.bf16.mxu0 0
      %437 = vmatpush1.bf16.msra.mxu0 %v412
      %438 = vmatprep.subr.bf16.mxu0 0
      %439 = vmatpush1.bf16.msra.mxu0 %v411
      %440 = vmatprep.subr.bf16.mxu0 0
      %441 = vmatpush1.bf16.msra.mxu0 %v410
      %442 = vmatprep.subr.bf16.mxu0 0
      %443 = vmatpush2.bf16.msra.mxu0 0
      %444 = vmatprep.subr.bf16.mxu0 0
      %445 = vmatpush2.bf16.msra.mxu0 0
      %446 = vmatprep.subr.bf16.mxu0 0
      %447 = vmatpush2.bf16.msra.mxu0 0
      %448 = vmatprep.subr.bf16.mxu0 0
      %449 = vmatpush2.bf16.msra.mxu0 0
      %450 = vmatprep.subr.bf16.mxu0 0
      %451 = vmatpush2.bf16.msra.mxu0 0
      %452 = vmatprep.subr.bf16.mxu0 0
      %453 = vmatpush2.bf16.msra.mxu0 0
      %454 = vmatprep.subr.bf16.mxu0 0
      %455 = vmatpush2.bf16.msra.mxu0 0
      %456 = vmatprep.subr.bf16.mxu0 0
      %457 = vmatpush2.bf16.msra.mxu0 0
      %458 = vmatprep.mubr.bf16.mxu0 0
      %459 = vmatmul.mubr.bf16.gmra.mxu0 %v346
      %v460 = vpop.f32.mrf.mxu0
      %v461 = vadd.f32 0.0, %v460
      %v462 = vpop.f32.mrf.mxu0
      %v463 = vpop.f32.mrf.mxu0
      %v464 = vadd.f32 0.0, %v463
      %v465 = vpop.f32.mrf.mxu0
      %466 = vmatprep.mubr.bf16.mxu0 0
      %467 = vmatmul.mubr.bf16.gmra.mxu0 %v347
      %v468 = vpop.f32.mrf.mxu0
      %v469 = vadd.f32 0.0, %v468
      %v470 = vpop.f32.mrf.mxu0
      %v471 = vpop.f32.mrf.mxu0
      %v472 = vadd.f32 0.0, %v471
      %v473 = vpop.f32.mrf.mxu0
      %474 = vmatprep.mubr.bf16.mxu0 0
      %475 = vmatmul.mubr.bf16.gmra.mxu0 %v348
      %v476 = vpop.f32.mrf.mxu0
      %v477 = vadd.f32 0.0, %v476
      %v478 = vpop.f32.mrf.mxu0
      %v479 = vpop.f32.mrf.mxu0
      %v480 = vadd.f32 0.0, %v479
      %v481 = vpop.f32.mrf.mxu0
      %482 = vmatprep.mubr.bf16.mxu0 0
      %483 = vmatmul.mubr.bf16.gmra.mxu0 %v349
      %v484 = vpop.f32.mrf.mxu0
      %v485 = vadd.f32 0.0, %v484
      %v486 = vpop.f32.mrf.mxu0
      %v487 = vpop.f32.mrf.mxu0
      %v488 = vadd.f32 0.0, %v487
      %v489 = vpop.f32.mrf.mxu0
      %490 = vmatprep.mubr.bf16.mxu0 0
      %491 = vmatmul.mubr.bf16.gmra.mxu0 %v350
      %v492 = vpop.f32.mrf.mxu0
      %v493 = vadd.f32 0.0, %v492
      %v494 = vpop.f32.mrf.mxu0
      %v495 = vpop.f32.mrf.mxu0
      %v496 = vpop.f32.mrf.mxu0
      %497 = vmatprep.mubr.bf16.mxu0 0
      %498 = vmatmul.mubr.bf16.gmra.mxu0 %v351
      %v499 = vpop.f32.mrf.mxu0
      %v500 = vpop.f32.mrf.mxu0
      %v501 = vpop.f32.mrf.mxu0
      %v502 = vpop.f32.mrf.mxu0
      %503 = vmatprep.mubr.bf16.mxu0 0
      %504 = vmatmul.mubr.bf16.gmra.mxu0 %v352
      %v505 = vpop.f32.mrf.mxu0
      %v506 = vpop.f32.mrf.mxu0
      %v507 = vpop.f32.mrf.mxu0
      %v508 = vpop.f32.mrf.mxu0
      %509 = vmatprep.mubr.bf16.mxu0 0
      %510 = vmatmul.mubr.bf16.gmra.mxu0 %v353
      %v511 = vpop.f32.mrf.mxu0
      %v512 = vpop.f32.mrf.mxu0
      %v513 = vpop.f32.mrf.mxu0
      %v514 = vpop.f32.mrf.mxu0
      %515 = vmatprep.mubr.bf16.mxu0 0
      %516 = vmatmul.mubr.bf16.gmra.mxu0 %v354
      %v517 = vpop.f32.mrf.mxu0
      %v518 = vadd.f32 0.0, %v517
      %v519 = vpop.f32.mrf.mxu0
      %v520 = vpop.f32.mrf.mxu0
      %v521 = vadd.f32 0.0, %v520
      %v522 = vpop.f32.mrf.mxu0
      %523 = vmatprep.mubr.bf16.mxu0 0
      %524 = vmatmul.mubr.bf16.gmra.mxu0 %v355
      %v525 = vpop.f32.mrf.mxu0
      %v526 = vadd.f32 0.0, %v525
      %v527 = vpop.f32.mrf.mxu0
      %v528 = vpop.f32.mrf.mxu0
      %v529 = vadd.f32 0.0, %v528
      %v530 = vpop.f32.mrf.mxu0
      %531 = vmatprep.mubr.bf16.mxu0 0
      %532 = vmatmul.mubr.bf16.gmra.mxu0 %v356
      %v533 = vpop.f32.mrf.mxu0
      %v534 = vadd.f32 0.0, %v533
      %v535 = vpop.f32.mrf.mxu0
      %v536 = vpop.f32.mrf.mxu0
      %v537 = vadd.f32 0.0, %v536
      %v538 = vpop.f32.mrf.mxu0
      %539 = vmatprep.mubr.bf16.mxu0 0
      %540 = vmatmul.mubr.bf16.gmra.mxu0 %v357
      %v541 = vpop.f32.mrf.mxu0
      %v542 = vadd.f32 0.0, %v541
      %v543 = vpop.f32.mrf.mxu0
      %v544 = vpop.f32.mrf.mxu0
      %v545 = vadd.f32 0.0, %v544
      %v546 = vpop.f32.mrf.mxu0
      %547 = vmatprep.mubr.bf16.mxu0 0
      %548 = vmatmul.mubr.bf16.gmra.mxu0 %v358
      %v549 = vpop.f32.mrf.mxu0
      %v550 = vadd.f32 0.0, %v549
      %v551 = vpop.f32.mrf.mxu0
      %v552 = vpop.f32.mrf.mxu0
      %v553 = vpop.f32.mrf.mxu0
      %554 = vmatprep.mubr.bf16.mxu0 0
      %555 = vmatmul.mubr.bf16.gmra.mxu0 %v359
      %v556 = vpop.f32.mrf.mxu0
      %v557 = vpop.f32.mrf.mxu0
      %v558 = vpop.f32.mrf.mxu0
      %v559 = vpop.f32.mrf.mxu0
      %560 = vmatprep.mubr.bf16.mxu0 0
      %561 = vmatmul.mubr.bf16.gmra.mxu0 %v360
      %v562 = vpop.f32.mrf.mxu0
      %v563 = vpop.f32.mrf.mxu0
      %v564 = vpop.f32.mrf.mxu0
      %v565 = vpop.f32.mrf.mxu0
      %566 = vmatprep.mubr.bf16.mxu0 0
      %567 = vmatmul.mubr.bf16.gmra.mxu0 %v361
      %v568 = vpop.f32.mrf.mxu0
      %v569 = vpop.f32.mrf.mxu0
      %v570 = vpop.f32.mrf.mxu0
      %v571 = vpop.f32.mrf.mxu0
      %572 = vdwg.mxu0
      %v573 = vmul.f32 %v461, %v461
      %v574 = vmul.f32 %v464, %v464
      %v575 = vmul.f32 %v469, %v469
      %v576 = vmul.f32 %v472, %v472
      %v577 = vmul.f32 %v477, %v477
      %v578 = vmul.f32 %v480, %v480
      %v579 = vmul.f32 %v485, %v485
      %v580 = vmul.f32 %v488, %v488
      %v581 = vmul.f32 %v493, %v493
      %v582 = vmul.f32 %v518, %v518
      %v583 = vmul.f32 %v521, %v521
      %v584 = vmul.f32 %v526, %v526
      %v585 = vmul.f32 %v529, %v529
      %v586 = vmul.f32 %v534, %v534
      %v587 = vmul.f32 %v537, %v537
      %v588 = vmul.f32 %v542, %v542
      %v589 = vmul.f32 %v545, %v545
      %v590 = vmul.f32 %v550, %v550
      %v591 = vadd.f32 %v573, %v582
      %v592 = vadd.f32 %v574, %v583
      %v593 = vadd.f32 %v575, %v584
      %v594 = vadd.f32 %v576, %v585
      %v595 = vadd.f32 %v577, %v586
      %v596 = vadd.f32 %v578, %v587
      %v597 = vadd.f32 %v579, %v588
      %v598 = vadd.f32 %v580, %v589
      %v599 = vadd.f32 %v581, %v590
      %v600 = vadd.f32 %v591, 1.0
      %v601 = vlog2.pop %v600
      %v602 = vmul.f32 %v601, 0.6931472
      %v603 = vmul.f32 -0.5, %v591
      %v604 = vadd.f32 %v603, 1.0
      %v605 = vmul.f32 %v604, %v591
      %v606 = vand.u32 2147483647, %v591
      %vm607 = vcmp.lt.f32.partialorder %v606, 0.0004427343
      %v608 = vsel %vm607, %v605, %v602
      %v609 = vadd.f32 %v592, 1.0
      %v610 = vlog2.pop %v609
      %v611 = vmul.f32 %v610, 0.6931472
      %v612 = vmul.f32 -0.5, %v592
      %v613 = vadd.f32 %v612, 1.0
      %v614 = vmul.f32 %v613, %v592
      %v615 = vand.u32 2147483647, %v592
      %vm616 = vcmp.lt.f32.partialorder %v615, 0.0004427343
      %v617 = vsel %vm616, %v614, %v611
      %v618 = vadd.f32 %v593, 1.0
      %v619 = vlog2.pop %v618
      %v620 = vmul.f32 %v619, 0.6931472
      %v621 = vmul.f32 -0.5, %v593
      %v622 = vadd.f32 %v621, 1.0
      %v623 = vmul.f32 %v622, %v593
      %v624 = vand.u32 2147483647, %v593
      %vm625 = vcmp.lt.f32.partialorder %v624, 0.0004427343
      %v626 = vsel %vm625, %v623, %v620
      %v627 = vadd.f32 %v594, 1.0
      %v628 = vlog2.pop %v627
      %v629 = vmul.f32 %v628, 0.6931472
      %v630 = vmul.f32 -0.5, %v594
      %v631 = vadd.f32 %v630, 1.0
      %v632 = vmul.f32 %v631, %v594
      %v633 = vand.u32 2147483647, %v594
      %vm634 = vcmp.lt.f32.partialorder %v633, 0.0004427343
      %v635 = vsel %vm634, %v632, %v629
      %v636 = vadd.f32 %v595, 1.0
      %v637 = vlog2.pop %v636
      %v638 = vmul.f32 %v637, 0.6931472
      %v639 = vmul.f32 -0.5, %v595
      %v640 = vadd.f32 %v639, 1.0
      %v641 = vmul.f32 %v640, %v595
      %v642 = vand.u32 2147483647, %v595
      %vm643 = vcmp.lt.f32.partialorder %v642, 0.0004427343
      %v644 = vsel %vm643, %v641, %v638
      %v645 = vadd.f32 %v596, 1.0
      %v646 = vlog2.pop %v645
      %v647 = vmul.f32 %v646, 0.6931472
      %v648 = vmul.f32 -0.5, %v596
      %v649 = vadd.f32 %v648, 1.0
      %v650 = vmul.f32 %v649, %v596
      %v651 = vand.u32 2147483647, %v596
      %vm652 = vcmp.lt.f32.partialorder %v651, 0.0004427343
      %v653 = vsel %vm652, %v650, %v647
      %v654 = vadd.f32 %v597, 1.0
      %v655 = vlog2.pop %v654
      %v656 = vmul.f32 %v655, 0.6931472
      %v657 = vmul.f32 -0.5, %v597
      %v658 = vadd.f32 %v657, 1.0
      %v659 = vmul.f32 %v658, %v597
      %v660 = vand.u32 2147483647, %v597
      %vm661 = vcmp.lt.f32.partialorder %v660, 0.0004427343
      %v662 = vsel %vm661, %v659, %v656
      %v663 = vadd.f32 %v598, 1.0
      %v664 = vlog2.pop %v663
      %v665 = vmul.f32 %v664, 0.6931472
      %v666 = vmul.f32 -0.5, %v598
      %v667 = vadd.f32 %v666, 1.0
      %v668 = vmul.f32 %v667, %v598
      %v669 = vand.u32 2147483647, %v598
      %vm670 = vcmp.lt.f32.partialorder %v669, 0.0004427343
      %v671 = vsel %vm670, %v668, %v665
      %v672 = vadd.f32 %v599, 1.0
      %v673 = vlog2.pop %v672
      %v674 = vmul.f32 %v673, 0.6931472
      %v675 = vmul.f32 -0.5, %v599
      %v676 = vadd.f32 %v675, 1.0
      %v677 = vmul.f32 %v676, %v599
      %v678 = vand.u32 2147483647, %v599
      %vm679 = vcmp.lt.f32.partialorder %v678, 0.0004427343
      %v680 = vsel %vm679, %v677, %v674
      %v681 = vld [vmem:[#allocation2] sm:$0x1]
      %v683 = vlaneseq
      %v684 = vshrl.u32 %v683, 7
      %v685 = vsub.s32 0, %v684
      %v686 = vrot.slane %v681, %v685
      %687 = vset.pattern.permute.xlu0 0
      %688 = vperm.xlu0 %687, %v686
      %v689 = vpop.permute.xlu0 %688
      %v691 = vsub.f32 %v608, %v689
      %v692 = vsub.f32 %v617, %v689
      %v693 = vsub.f32 %v626, %v689
      %v694 = vsub.f32 %v635, %v689
      %v695 = vsub.f32 %v644, %v689
      %v696 = vsub.f32 %v653, %v689
      %v697 = vsub.f32 %v662, %v689
      %v698 = vsub.f32 %v671, %v689
      %v699 = vsub.f32 %v680, %v689
      %v700 = vld [vmem:[#allocation3] sm:$0x1]
      %v702 = vlaneseq
      %v703 = vshrl.u32 %v702, 7
      %v704 = vsub.s32 0, %v703
      %v705 = vrot.slane %v700, %v704
      %706 = vset.pattern.permute.xlu0 0
      %707 = vperm.xlu0 %706, %v705
      %v708 = vpop.permute.xlu0 %707
      %v710 = vmul.f32 %v691, %v708
      %v711 = vmul.f32 %v692, %v708
      %v712 = vmul.f32 %v693, %v708
      %v713 = vmul.f32 %v694, %v708
      %v714 = vmul.f32 %v695, %v708
      %v715 = vmul.f32 %v696, %v708
      %v716 = vmul.f32 %v697, %v708
      %v717 = vmul.f32 %v698, %v708
      %v718 = vmul.f32 %v699, %v708
      %719 = vst [vmem:[%s232] sm:$0xff] %v710
      %720 = vst [vmem:[%s232 + $0x8] sm:$0xff] %v711
      %721 = vst [vmem:[%s232 + $0x10] sm:$0xff] %v712
      %722 = vst [vmem:[%s232 + $0x18] sm:$0xff] %v713
      %723 = vst [vmem:[%s232 + $0x20] sm:$0xff] %v714
      %724 = vst [vmem:[%s232 + $0x28] sm:$0xff] %v715
      %725 = vst [vmem:[%s232 + $0x30] sm:$0xff] %v716
      %726 = vst [vmem:[%s232 + $0x38] sm:$0xff] %v717
      %727 = vst [vmem:[%s232 + $0x40] sm:$0x1] %v718
      %p728 = scmp.lt.s32.totalorder %s23, 1
      %s729 = scalar_select %p728, %s23, 1
      %p730 = scmp.lt.s32.totalorder %s24, 0
      %s731 = scalar_select %p730, %s24, 0
      %s732 = smul.addr %s729, 9
      %s733 = sadd.s32 %s731, %s732
      %s734 = smul.addr %s733, 8
      %s735 = scalar_lea.vmem %s4, %s734
      // Predicated region
      $region37: #{deepspeech_feature_extractor.3} parent=35 // pred_check
        %p736 = pneg %p142
      $region38: #{deepspeech_feature_extractor.3} parent=35 // pred_check_branch
        %738 = sbr.rel (%p736) target = $region40
      $region39: #{deepspeech_feature_extractor.3} parent=35 // pred_region
        _
      $region40: #{deepspeech_feature_extractor.3} parent=35 // pred_fallthru
        _
    $region36: #{deepspeech_feature_extractor.3} parent=5 // pred_fallthru
      _
    %p739 = scmp.le.s32.totalorder 2, %s14
    // Predicated region
    $region41: #{deepspeech_feature_extractor.3} parent=5 // pred_check
      %p740 = pneg %p739
    $region42: #{deepspeech_feature_extractor.3} parent=5 // pred_check_branch
      %742 = sbr.rel (%p740) target = $region44
    $region43: #{deepspeech_feature_extractor.3} parent=5 // pred_region
      %s743 = ssub.s32 %s14, 2
      // Predicated region
      $region45: #{deepspeech_feature_extractor.3} parent=43 // pred_check
        %p744 = pneg %p148
      $region46: #{deepspeech_feature_extractor.3} parent=43 // pred_check_branch
        %746 = sbr.rel (%p744) target = $region48
      $region47: #{deepspeech_feature_extractor.3} parent=43 // pred_region
        %p747 = scmp.lt.s32.totalorder %s25, 1
        %s748 = scalar_select %p747, %s25, 1
        %p749 = scmp.lt.s32.totalorder %s26, 0
        %s750 = scalar_select %p749, %s26, 0
        %s751 = smul.addr %s748, 9
        %s752 = sadd.s32 %s750, %s751
        %s753 = smul.addr %s752, 8
        %s754 = scalar_lea.vmem %s4, %s753
      $region48: #{deepspeech_feature_extractor.3} parent=43 // pred_fallthru
        _
    $region44: #{deepspeech_feature_extractor.3} parent=5 // pred_fallthru
      _
  $region6: #{deepspeech_feature_extractor.3} parent=0 // loop_footer
    %s18 = sadd.s32 1, %s14
  $region7: #{deepspeech_feature_extractor.3} parent=0 // loop_footer_branch
    %13 = sbr.rel target = $region3
  $region8: #{deepspeech_feature_extractor.3} parent=0 // loop_exit
    _

</llo_original>
